<compile_context>
chip_gen: v7x
topology: tpu7x:2x2x1
jax: 0.10.0
libtpu: 0.0.40
codegen_flags: <defaults>
</compile_context>

<pallas_src>
import jax
import jax.numpy as jnp
from jax.experimental import pallas as pl
from jax.experimental.pallas import tpu as pltpu

HIDDEN = 128
CRITIC_HIDDEN = 64
LANES = 128  # lane-dense output width


# ----------------------------- Pallas kernel --------------------------------
def _ac_gnn_kernel(
    x_ref, a_ref, p_ref,            # bf16 data blocks: [TM,F], [TM,TM], [TG,TM]
    w1_ref, w2_ref,                 # bf16 weights: [F,256], [256,256] or [256,128]
    amw_ref, f1w_ref, f2w_ref,      # bf16 padded heads: [128,128] each
    bias_ref,                       # f32 packed biases: [8,256]
    mean_ref, value_ref,            # outputs: bf16 [TM,128], f32 [TG,128]
    *scratch,                       # split-W2 path only: f32 [TM,256] scratch
):
  f32 = jnp.float32
  bf16 = jnp.bfloat16
  split_w2 = w2_ref.shape[1] == HIDDEN   # [256,128] stacked (aw2;cw2) -> split

  a = a_ref[...]                                   # [TM, TM] block-diag A_hat

  b_l1 = bias_ref[0:1, :]                          # [1,256] = [ab1 | cb1]
  b_l2 = bias_ref[1:2, :]                          # [1,256] = [ab2 | cb2]
  b_mean = bias_ref[2:3, 0:LANES]                  # [1,128] amb (zero-padded)
  b_f1 = bias_ref[3:4, 0:LANES]                    # [1,128] f1b (zero-padded)
  b_f2 = bias_ref[4:5, 0:LANES]                    # [1,128] f2b (zero-padded)

  # Shared neighbourhood aggregation of raw features (A @ X), reused by actor
  # and critic; layer-1 then becomes (A @ X) @ W by associativity.
  ax = jnp.dot(a, x_ref[...], preferred_element_type=f32)              # [TM, F]

  # Fused actor|critic layer 1: one 256-wide RHS.
  h1 = jnp.maximum(
      jnp.dot(ax.astype(bf16), w1_ref[...], preferred_element_type=f32) + b_l1,
      0.0)                                                             # [TM, 256]

  # Layer-2 feature transform.
  if split_w2:
    # v5e-style 128x128 MXU: two dense [*,128]@[128,128] matmuls (no zero
    # blocks), written into a VMEM scratch slab so the A-pass stays 256-wide.
    hw2_sc = scratch[0]
    hw2_sc[:, 0:HIDDEN] = jnp.dot(
        h1[:, 0:HIDDEN].astype(bf16), w2_ref[0:HIDDEN, :],
        preferred_element_type=f32)
    hw2_sc[:, HIDDEN:2 * HIDDEN] = jnp.dot(
        h1[:, HIDDEN:2 * HIDDEN].astype(bf16), w2_ref[HIDDEN:2 * HIDDEN, :],
        preferred_element_type=f32)
    hw2 = hw2_sc[...]
  else:
    # v6e/v7x 256-wide MXU: fused block-diag(aw2, cw2) RHS.
    hw2 = jnp.dot(h1.astype(bf16), w2_ref[...], preferred_element_type=f32)

  # Single 256-wide propagation pass for layer 2.
  h2 = jnp.maximum(
      jnp.dot(a, hw2.astype(bf16), preferred_element_type=f32) + b_l2,
      0.0)                                                             # [TM, 256]

  h_actor = h2[:, 0:HIDDEN]                                            # [TM, 128]
  h_critic = h2[:, HIDDEN:2 * HIDDEN]                                  # [TM, 128]

  # Actor mean head (128-lane padded -> unmasked vst), emitted as bf16.
  mean_ref[...] = jnp.tanh(
      jnp.dot(h_actor.astype(bf16), amw_ref[...], preferred_element_type=f32)
      + b_mean).astype(mean_ref.dtype)                                 # [TM, 128]

  # Critic: block-diag global_mean_pool (P_bd @ H) then the padded MLP head.
  g = jnp.dot(p_ref[...], h_critic.astype(bf16),
              preferred_element_type=f32)                              # [TG, 128]
  v = jnp.maximum(
      jnp.dot(g.astype(bf16), f1w_ref[...], preferred_element_type=f32) + b_f1,
      0.0)
  value_ref[...] = (
      jnp.dot(v.astype(bf16), f2w_ref[...], preferred_element_type=f32) + b_f2)


# ------------------------------- glue / wrapper ------------------------------
def build_gcn_adj(edge_index, num_nodes):
  """Dense D^-1/2 (A + I) D^-1/2.  edge_index: [2, E] (src, dst)."""
  src, dst = edge_index[0], edge_index[1]
  loop = jnp.arange(num_nodes, dtype=edge_index.dtype)
  src = jnp.concatenate([src, loop])
  dst = jnp.concatenate([dst, loop])
  adj = jnp.zeros((num_nodes, num_nodes), jnp.float32).at[dst, src].add(1.0)
  deg = adj.sum(axis=1)
  dinv = 1.0 / jnp.sqrt(jnp.maximum(deg, 1.0))
  return dinv[:, None] * adj * dinv[None, :]


def build_pool(batch, num_graphs):
  """Row-normalized [G, N] assignment matrix for global_mean_pool."""
  onehot = (batch[None, :] == jnp.arange(num_graphs)[:, None]).astype(jnp.float32)
  counts = onehot.sum(axis=1, keepdims=True)
  return onehot / jnp.maximum(counts, 1.0)


def init_params(key, node_feature_dim, action_dim):
  ks = jax.random.split(key, 7)

  def w(k, i, o):
    s = 1.0 / jnp.sqrt(jnp.float32(i))
    return jax.random.uniform(k, (i, o), jnp.float32, -s, s)

  return dict(
      aw1=w(ks[0], node_feature_dim, HIDDEN),
      ab1=jnp.zeros((1, HIDDEN), jnp.float32),
      aw2=w(ks[1], HIDDEN, HIDDEN),
      ab2=jnp.zeros((1, HIDDEN), jnp.float32),
      amw=w(ks[2], HIDDEN, action_dim),
      amb=jnp.zeros((1, action_dim), jnp.float32),
      alogstd=jnp.zeros((1, action_dim), jnp.float32),
      cw1=w(ks[3], node_feature_dim, HIDDEN),
      cb1=jnp.zeros((1, HIDDEN), jnp.float32),
      cw2=w(ks[4], HIDDEN, HIDDEN),
      cb2=jnp.zeros((1, HIDDEN), jnp.float32),
      f1w=w(ks[5], HIDDEN, CRITIC_HIDDEN),
      f1b=jnp.zeros((1, CRITIC_HIDDEN), jnp.float32),
      f2w=w(ks[6], CRITIC_HIDDEN, 1),
      f2b=jnp.zeros((1, 1), jnp.float32),
  )


def _mxu_is_128_wide():
  """True on generations with a 128x128 MXU (v5e and earlier) -> split W2."""
  try:
    kind = jax.devices()[0].device_kind.lower()
  except Exception:
    return False
  return any(tag in kind for tag in ("v2", "v3", "v4", "v5"))


def _vmem_capacity_bytes():
  """Per-core VMEM capacity; conservative fallback if the query is unavailable."""
  try:
    info = pltpu.get_tpu_info()
    cap = getattr(info, "vmem_capacity_bytes", None)
    if cap:
      return int(cap)
  except Exception:
    pass
  return 64 << 20  # v7x per-TensorCore size: safe lower bound


def pack_params(params, split_w2=None):
  """Fuse / pad / bf16-cast weights once; reuse across forward calls."""
  bf16 = jnp.bfloat16
  if split_w2 is None:
    split_w2 = _mxu_is_128_wide()
  action_dim = params["amw"].shape[1]

  # Fused layer-1: [F, 256] = [aw1 | cw1]
  w1 = jnp.concatenate([params["aw1"], params["cw1"]], axis=1).astype(bf16)

  if split_w2:
    # v5e path: stacked [aw2; cw2] -> [256, 128]; kernel runs two dense matmuls.
    w2 = jnp.concatenate([params["aw2"], params["cw2"]], axis=0).astype(bf16)
  else:
    # v6e/v7x path: block-diag(aw2, cw2) -> [256, 256] fused RHS.
    z = jnp.zeros((HIDDEN, HIDDEN), jnp.float32)
    w2 = jnp.concatenate([
        jnp.concatenate([params["aw2"], z], axis=1),
        jnp.concatenate([z, params["cw2"]], axis=1)], axis=0).astype(bf16)

  # Lane-dense padded heads (zeros in padded lanes keep padded outputs exact).
  amw = jnp.zeros((HIDDEN, LANES), jnp.float32).at[:, :action_dim].set(
      params["amw"]).astype(bf16)
  f1w = jnp.zeros((HIDDEN, LANES), jnp.float32).at[:, :CRITIC_HIDDEN].set(
      params["f1w"]).astype(bf16)
  f2w = jnp.zeros((LANES, LANES), jnp.float32).at[:CRITIC_HIDDEN, :1].set(
      params["f2w"]).astype(bf16)

  # One packed (8, 256) f32 bias slab (single DMA). Padded lanes MUST stay 0.
  bias = jnp.zeros((8, 2 * HIDDEN), jnp.float32)
  bias = bias.at[0, :].set(jnp.concatenate([params["ab1"][0], params["cb1"][0]]))
  bias = bias.at[1, :].set(jnp.concatenate([params["ab2"][0], params["cb2"][0]]))
  bias = bias.at[2, :action_dim].set(params["amb"][0])
  bias = bias.at[3, :CRITIC_HIDDEN].set(params["f1b"][0])
  bias = bias.at[4, :1].set(params["f2b"][0])

  return dict(w1=w1, w2=w2, amw=amw, f1w=f1w, f2w=f2w, bias=bias,
              alogstd=params["alogstd"], action_dim=action_dim,
              split_w2=bool(split_w2))


def _ceil_to(a, b):
  return -(-a // b) * b


def _pick_tb(b, n, g, target_rows=512):
  """Env-steps per grid block: fill the MXU M dim (~512 rows) when possible."""
  tb = max(1, min(b, target_rows // max(n, 1)))
  if tb >= b:
    return b  # single block: block_shape == full array dims, no constraints
  while (tb * n) % 8 != 0 or (tb * g) % 8 != 0:
    tb += 1
    if tb >= b:
      return b
  return tb


def _block_vmem_bytes(tm, tg, f, w2_shape):
  pad8 = lambda r: _ceil_to(max(int(r), 1), 8)
  padl = lambda c: _ceil_to(max(int(c), 1), LANES)
  byt = 0
  byt += pad8(tm) * padl(f) * 2            # x block (bf16, lane-padded)
  byt += pad8(tm) * padl(tm) * 2           # block-diag A
  byt += pad8(tg) * padl(tm) * 2           # block-diag pool
  byt += 8 * padl(2 * HIDDEN) * 2          # w1
  byt += pad8(w2_shape[0]) * padl(w2_shape[1]) * 2
  byt += 3 * HIDDEN * LANES * 2            # heads
  byt += 8 * 2 * HIDDEN * 4                # bias slab
  byt += pad8(tm) * LANES * 2              # mean out (bf16)
  byt += pad8(tg) * LANES * 4              # value out (f32)
  return byt


def actor_critic_gnn_forward(packed, x, a_hat, pool, tb=None):
  """Batched forward.

  x:      [B, N, F] (or [N, F] for a single step) node features.
  a_hat:  [N, N] normalized adjacency, shared across the B env steps.
  pool:   [G, N] row-normalized graph assignment, shared across env steps.
  Returns (mean [B,N,A], std [B,N,A], value [B,G,1]) -- Normal(mean, std)
  parameters and critic values (squeezed when x was 2-D).
  """
  squeeze = x.ndim == 2
  if squeeze:
    x = x[None]
  B, N, F = x.shape
  G = pool.shape[0]
  action_dim = packed["action_dim"]
  split_w2 = packed["split_w2"]
  bf16 = jnp.bfloat16

  if tb is None:
    tb = _pick_tb(B, N, G)
  tb = max(1, min(int(tb), B))
  b_pad = _ceil_to(B, tb)
  nblocks = b_pad // tb
  TM = tb * N
  TG = tb * G
  if nblocks > 1:
    assert TM % 8 == 0 and TG % 8 == 0, "pick tb so tb*N and tb*G are multiples of 8"

  if b_pad != B:
    x = jnp.concatenate([x, jnp.zeros((b_pad - B, N, F), x.dtype)], axis=0)
  x2 = x.reshape(b_pad * N, F).astype(bf16)

  # Per-block block-diagonal graph operators (identical across blocks -> the
  # constant-index BlockSpecs below keep them resident after the first DMA).
  # TODO(synk): replace with a CSR scalar-prefetch A-pass and per-graph
  #   row-block-mean pooling for large / sparse graphs.
  a_bd = jnp.kron(jnp.eye(tb, dtype=jnp.float32), a_hat).astype(bf16)    # [TM,TM]
  p_bd = jnp.kron(jnp.eye(tb, dtype=jnp.float32), pool).astype(bf16)     # [TG,TM]

  out_shape = (
      jax.ShapeDtypeStruct((b_pad * N, LANES), jnp.bfloat16),   # mean (padded)
      jax.ShapeDtypeStruct((b_pad * G, LANES), jnp.float32),    # value (padded)
  )

  # Generation-aware VMEM budget: 2x per-block footprint (double-buffered
  # BlockSpecs) + activation temps + headroom, capped by the chip's capacity.
  block_bytes = _block_vmem_bytes(TM, TG, F, packed["w2"].shape)
  temps = 8 * TM * 2 * HIDDEN * 4
  scratch_bytes = TM * 2 * HIDDEN * 4 if split_w2 else 0
  vmem_need = 2 * block_bytes + temps + scratch_bytes + (4 << 20)
  cap = _vmem_capacity_bytes()
  vmem_limit = int(min(max(vmem_need, 16 << 20), max(cap - (8 << 20), 16 << 20)))

  mt = b_pad * N
  flops = 2 * (
      nblocks * TM * TM * F                 # A @ X per block (block-diag dense)
      + mt * F * 2 * HIDDEN                 # (A@X) @ W1_fused
      + mt * 2 * HIDDEN * packed["w2"].shape[1]  # layer-2 feature transform
      + nblocks * TM * TM * 2 * HIDDEN      # A @ HW2 (single 256-wide pass)
      + mt * HIDDEN * LANES                 # mean head
      + nblocks * TG * TM * HIDDEN          # pooling
      + b_pad * G * 2 * HIDDEN * LANES)     # critic MLP
  in_bytes = (x2.size * 2 + a_bd.size * 2 + p_bd.size * 2
              + packed["w1"].size * 2 + packed["w2"].size * 2
              + 3 * HIDDEN * LANES * 2 + packed["bias"].size * 4)
  out_bytes = b_pad * N * LANES * 2 + b_pad * G * LANES * 4
  cost = pl.CostEstimate(flops=int(flops), transcendentals=int(mt * LANES),
                         bytes_accessed=int(in_bytes + out_bytes))

  in_specs = [
      pl.BlockSpec((TM, F), lambda i: (i, 0)),                 # x (grid-varying)
      pl.BlockSpec((TM, TM), lambda i: (0, 0)),                # block-diag A
      pl.BlockSpec((TG, TM), lambda i: (0, 0)),                # block-diag pool
      pl.BlockSpec((F, 2 * HIDDEN), lambda i: (0, 0)),         # w1
      pl.BlockSpec(packed["w2"].shape, lambda i: (0, 0)),      # w2
      pl.BlockSpec((HIDDEN, LANES), lambda i: (0, 0)),         # amw
      pl.BlockSpec((HIDDEN, LANES), lambda i: (0, 0)),         # f1w
      pl.BlockSpec((LANES, LANES), lambda i: (0, 0)),          # f2w
      pl.BlockSpec((8, 2 * HIDDEN), lambda i: (0, 0)),         # bias slab
  ]
  out_specs = (
      pl.BlockSpec((TM, LANES), lambda i: (i, 0)),             # mean
      pl.BlockSpec((TG, LANES), lambda i: (i, 0)),             # value
  )
  scratch_shapes = ([pltpu.VMEM((TM, 2 * HIDDEN), jnp.float32)]
                    if split_w2 else [])

  mean_pad, value_pad = pl.pallas_call(
      _ac_gnn_kernel,
      out_shape=out_shape,
      grid=(nblocks,),
      in_specs=in_specs,
      out_specs=out_specs,
      scratch_shapes=scratch_shapes,
      compiler_params=pltpu.CompilerParams(
          dimension_semantics=("parallel",),
          vmem_limit_bytes=vmem_limit),
      cost_estimate=cost,
  )(x2, a_bd, p_bd, packed["w1"], packed["w2"], packed["amw"],
    packed["f1w"], packed["f2w"], packed["bias"])

  mean = mean_pad[:B * N, :action_dim].astype(jnp.float32).reshape(B, N, action_dim)
  value = value_pad[:B * G, :1].reshape(B, G, 1)
  # std is data-independent: exp on the (1, A) parameter, then broadcast.
  std = jnp.broadcast_to(jnp.exp(packed["alogstd"]), mean.shape)
  if squeeze:
    mean, std, value = mean[0], std[0], value[0]
  return mean, std, value


# pure-JAX f32 reference for one env step (for correctness check)
def _reference(params, x, edge_index, batch, num_graphs):
  a = build_gcn_adj(edge_index, x.shape[0])
  p = build_pool(batch, num_graphs)
  gcn = lambda h, w, b: a @ (h @ w) + b
  h = jax.nn.relu(gcn(x, params["aw1"], params["ab1"]))
  h = jax.nn.relu(gcn(h, params["aw2"], params["ab2"]))
  mean = jnp.tanh(h @ params["amw"] + params["amb"])
  std = jnp.exp(jnp.broadcast_to(params["alogstd"], mean.shape))
  c = jax.nn.relu(gcn(x, params["cw1"], params["cb1"]))
  c = jax.nn.relu(gcn(c, params["cw2"], params["cb2"]))
  g = p @ c
  v = jax.nn.relu(g @ params["f1w"] + params["f1b"]) @ params["f2w"] + params["f2b"]
  return mean, std, v


if __name__ == "__main__":
  node_feature_dim = 8
  action_dim = 4
  num_graphs = 2
  nodes_per_graph = 8
  n = num_graphs * nodes_per_graph           # 16 nodes per env step
  batch_steps = 16                           # B env steps batched per call

  key = jax.random.PRNGKey(0)
  k_x, k_p = jax.random.split(key)

  # deterministic node features for B env steps
  x = jax.random.normal(k_x, (batch_steps, n, node_feature_dim), jnp.float32)

  # two ring graphs (undirected: both edge directions present), shared structure
  src_list, dst_list = [], []
  for gi in range(num_graphs):
    base = gi * nodes_per_graph
    for i in range(nodes_per_graph):
      j = (i + 1) % nodes_per_graph
      src_list += [base + i, base + j]
      dst_list += [base + j, base + i]
  edge_index = jnp.array([src_list, dst_list], dtype=jnp.int32)   # [2, 32]
  batch = jnp.repeat(jnp.arange(num_graphs, dtype=jnp.int32), nodes_per_graph)

  params = init_params(k_p, node_feature_dim, action_dim)
  packed = pack_params(params)               # generation-aware W2 layout

  # Graph structure is static across steps -> build dense A_hat / P once.
  a_hat = build_gcn_adj(edge_index, n)
  pool = build_pool(batch, num_graphs)

  # tb=4 env steps per grid block -> grid=(4,), 64 rows per matmul in the demo
  # (auto-picked ~512 rows in production via tb=None).
  mean, std, value = actor_critic_gnn_forward(packed, x, a_hat, pool, tb=4)
  jax.block_until_ready((mean, std, value))

  # correctness vs pure-JAX f32 reference (kernel uses bf16 MXU operands with
  # f32 accumulation and a bf16 mean slab, so tolerances are loosened).
  ref = jax.vmap(lambda xb: _reference(params, xb, edge_index, batch, num_graphs))
  mean_r, std_r, value_r = ref(x)
  assert mean.shape == mean_r.shape and std.shape == std_r.shape
  assert value.shape == value_r.shape
  assert jnp.allclose(mean, mean_r, atol=5e-2), "mean mismatch"
  assert jnp.allclose(std, std_r, atol=1e-6), "std mismatch"
  assert jnp.allclose(value, value_r, rtol=5e-2, atol=5e-2), "value mismatch"

  print("KERNEL_OK")
</pallas_src>

<mosaic_0001>
module attributes {stable_mosaic.version = 11 : i64} {
  func.func @_ac_gnn_kernel(%arg0: i32, %arg1: memref<64x8xbf16, #tpu.memory_space<vmem>>, %arg2: memref<64x64xbf16, #tpu.memory_space<vmem>>, %arg3: memref<8x64xbf16, #tpu.memory_space<vmem>>, %arg4: memref<8x256xbf16, #tpu.memory_space<vmem>>, %arg5: memref<256x256xbf16, #tpu.memory_space<vmem>>, %arg6: memref<128x128xbf16, #tpu.memory_space<vmem>>, %arg7: memref<128x128xbf16, #tpu.memory_space<vmem>>, %arg8: memref<128x128xbf16, #tpu.memory_space<vmem>>, %arg9: memref<8x256xf32, #tpu.memory_space<vmem>>, %arg10: memref<64x128xbf16, #tpu.memory_space<vmem>>, %arg11: memref<8x128xf32, #tpu.memory_space<vmem>>) attributes {dimension_semantics = [#tpu.dimension_semantics<parallel>], iteration_bounds = array<i64: 4>, scalar_prefetch = 0 : i64, scratch_operands = 0 : i64, tpu.core_type = #tpu.core_type<tc>, window_params = [{transform_indices = @transform_0, window_bounds = array<i64: 64, 8>}, {pipeline_mode = #tpu.pipeline_mode<synchronous>, transform_indices = @transform_1, window_bounds = array<i64: 64, 64>}, {pipeline_mode = #tpu.pipeline_mode<synchronous>, transform_indices = @transform_2, window_bounds = array<i64: 8, 64>}, {pipeline_mode = #tpu.pipeline_mode<synchronous>, transform_indices = @transform_3, window_bounds = array<i64: 8, 256>}, {pipeline_mode = #tpu.pipeline_mode<synchronous>, transform_indices = @transform_4, window_bounds = array<i64: 256, 256>}, {pipeline_mode = #tpu.pipeline_mode<synchronous>, transform_indices = @transform_5, window_bounds = array<i64: 128, 128>}, {pipeline_mode = #tpu.pipeline_mode<synchronous>, transform_indices = @transform_6, window_bounds = array<i64: 128, 128>}, {pipeline_mode = #tpu.pipeline_mode<synchronous>, transform_indices = @transform_7, window_bounds = array<i64: 128, 128>}, {pipeline_mode = #tpu.pipeline_mode<synchronous>, transform_indices = @transform_8, window_bounds = array<i64: 8, 256>}, {transform_indices = @transform_9, window_bounds = array<i64: 64, 128>}, {transform_indices = @transform_10, window_bounds = array<i64: 8, 128>}]} {
    %c0 = arith.constant 0 : index
    %c0_0 = arith.constant 0 : index
    %0 = vector.load %arg2[%c0, %c0_0] : memref<64x64xbf16, #tpu.memory_space<vmem>>, vector<64x64xbf16>
    %c0_1 = arith.constant 0 : index
    %c0_2 = arith.constant 0 : index
    %1 = vector.load %arg9[%c0_1, %c0_2] : memref<8x256xf32, #tpu.memory_space<vmem>>, vector<1x256xf32>
    %c1 = arith.constant 1 : index
    %c0_3 = arith.constant 0 : index
    %2 = vector.load %arg9[%c1, %c0_3] : memref<8x256xf32, #tpu.memory_space<vmem>>, vector<1x256xf32>
    %c2 = arith.constant 2 : index
    %c0_4 = arith.constant 0 : index
    %3 = vector.load %arg9[%c2, %c0_4] : memref<8x256xf32, #tpu.memory_space<vmem>>, vector<1x128xf32>
    %c3 = arith.constant 3 : index
    %c0_5 = arith.constant 0 : index
    %4 = vector.load %arg9[%c3, %c0_5] : memref<8x256xf32, #tpu.memory_space<vmem>>, vector<1x128xf32>
    %c4 = arith.constant 4 : index
    %c0_6 = arith.constant 0 : index
    %5 = vector.load %arg9[%c4, %c0_6] : memref<8x256xf32, #tpu.memory_space<vmem>>, vector<1x128xf32>
    %c0_7 = arith.constant 0 : index
    %c0_8 = arith.constant 0 : index
    %6 = vector.load %arg1[%c0_7, %c0_8] : memref<64x8xbf16, #tpu.memory_space<vmem>>, vector<64x8xbf16>
    %cst = arith.constant dense<0.000000e+00> : vector<64x8xf32>
    %7 = tpu.matmul %0, %6, %cst {dimension_numbers = #tpu.dot_dimension_numbers<[1], [0], [0], [1], [0, 0, 1, 1], [], []>} : vector<64x64xbf16>, vector<64x8xbf16>, vector<64x8xf32> -> vector<64x8xf32>
    %8 = arith.truncf %7 : vector<64x8xf32> to vector<64x8xbf16>
    %c0_9 = arith.constant 0 : index
    %c0_10 = arith.constant 0 : index
    %9 = vector.load %arg4[%c0_9, %c0_10] : memref<8x256xbf16, #tpu.memory_space<vmem>>, vector<8x256xbf16>
    %cst_11 = arith.constant dense<0.000000e+00> : vector<64x256xf32>
    %10 = tpu.matmul %8, %9, %cst_11 {dimension_numbers = #tpu.dot_dimension_numbers<[1], [0], [0], [1], [0, 0, 1, 1], [], []>} : vector<64x8xbf16>, vector<8x256xbf16>, vector<64x256xf32> -> vector<64x256xf32>
    %11 = vector.broadcast %1 : vector<1x256xf32> to vector<64x256xf32>
    %12 = arith.addf %10, %11 : vector<64x256xf32>
    %cst_12 = arith.constant 0.000000e+00 : f32
    %13 = vector.broadcast %cst_12 : f32 to vector<64x256xf32>
    %14 = arith.maximumf %12, %13 : vector<64x256xf32>
    %15 = arith.truncf %14 : vector<64x256xf32> to vector<64x256xbf16>
    %c0_13 = arith.constant 0 : index
    %c0_14 = arith.constant 0 : index
    %16 = vector.load %arg5[%c0_13, %c0_14] : memref<256x256xbf16, #tpu.memory_space<vmem>>, vector<256x256xbf16>
    %cst_15 = arith.constant dense<0.000000e+00> : vector<64x256xf32>
    %17 = tpu.matmul %15, %16, %cst_15 {dimension_numbers = #tpu.dot_dimension_numbers<[1], [0], [0], [1], [0, 0, 1, 1], [], []>} : vector<64x256xbf16>, vector<256x256xbf16>, vector<64x256xf32> -> vector<64x256xf32>
    %18 = arith.truncf %17 : vector<64x256xf32> to vector<64x256xbf16>
    %cst_16 = arith.constant dense<0.000000e+00> : vector<64x256xf32>
    %19 = tpu.matmul %0, %18, %cst_16 {dimension_numbers = #tpu.dot_dimension_numbers<[1], [0], [0], [1], [0, 0, 1, 1], [], []>} : vector<64x64xbf16>, vector<64x256xbf16>, vector<64x256xf32> -> vector<64x256xf32>
    %20 = vector.broadcast %2 : vector<1x256xf32> to vector<64x256xf32>
    %21 = arith.addf %19, %20 : vector<64x256xf32>
    %cst_17 = arith.constant 0.000000e+00 : f32
    %22 = vector.broadcast %cst_17 : f32 to vector<64x256xf32>
    %23 = arith.maximumf %21, %22 : vector<64x256xf32>
    %24 = vector.extract_strided_slice %23 {offsets = [0, 0], sizes = [64, 128], strides = [1, 1]} : vector<64x256xf32> to vector<64x128xf32>
    %25 = vector.extract_strided_slice %23 {offsets = [0, 128], sizes = [64, 128], strides = [1, 1]} : vector<64x256xf32> to vector<64x128xf32>
    %26 = arith.truncf %24 : vector<64x128xf32> to vector<64x128xbf16>
    %c0_18 = arith.constant 0 : index
    %c0_19 = arith.constant 0 : index
    %27 = vector.load %arg6[%c0_18, %c0_19] : memref<128x128xbf16, #tpu.memory_space<vmem>>, vector<128x128xbf16>
    %cst_20 = arith.constant dense<0.000000e+00> : vector<64x128xf32>
    %28 = tpu.matmul %26, %27, %cst_20 {dimension_numbers = #tpu.dot_dimension_numbers<[1], [0], [0], [1], [0, 0, 1, 1], [], []>} : vector<64x128xbf16>, vector<128x128xbf16>, vector<64x128xf32> -> vector<64x128xf32>
    %29 = vector.broadcast %3 : vector<1x128xf32> to vector<64x128xf32>
    %30 = arith.addf %28, %29 : vector<64x128xf32>
    %31 = math.tanh %30 : vector<64x128xf32>
    %32 = arith.truncf %31 : vector<64x128xf32> to vector<64x128xbf16>
    %c0_21 = arith.constant 0 : index
    %c0_22 = arith.constant 0 : index
    %33 = vector.load %arg10[%c0_21, %c0_22] : memref<64x128xbf16, #tpu.memory_space<vmem>>, vector<64x128xbf16>
    tpu.vector_store %arg10[%c0_21, %c0_22], %32 {strides = array<i32>} : memref<64x128xbf16, #tpu.memory_space<vmem>>, vector<64x128xbf16>,
    %c0_23 = arith.constant 0 : index
    %c0_24 = arith.constant 0 : index
    %34 = vector.load %arg3[%c0_23, %c0_24] : memref<8x64xbf16, #tpu.memory_space<vmem>>, vector<8x64xbf16>
    %35 = arith.truncf %25 : vector<64x128xf32> to vector<64x128xbf16>
    %cst_25 = arith.constant dense<0.000000e+00> : vector<8x128xf32>
    %36 = tpu.matmul %34, %35, %cst_25 {dimension_numbers = #tpu.dot_dimension_numbers<[1], [0], [0], [1], [0, 0, 1, 1], [], []>} : vector<8x64xbf16>, vector<64x128xbf16>, vector<8x128xf32> -> vector<8x128xf32>
    %37 = arith.truncf %36 : vector<8x128xf32> to vector<8x128xbf16>
    %c0_26 = arith.constant 0 : index
    %c0_27 = arith.constant 0 : index
    %38 = vector.load %arg7[%c0_26, %c0_27] : memref<128x128xbf16, #tpu.memory_space<vmem>>, vector<128x128xbf16>
    %cst_28 = arith.constant dense<0.000000e+00> : vector<8x128xf32>
    %39 = tpu.matmul %37, %38, %cst_28 {dimension_numbers = #tpu.dot_dimension_numbers<[1], [0], [0], [1], [0, 0, 1, 1], [], []>} : vector<8x128xbf16>, vector<128x128xbf16>, vector<8x128xf32> -> vector<8x128xf32>
    %40 = vector.broadcast %4 : vector<1x128xf32> to vector<8x128xf32>
    %41 = arith.addf %39, %40 : vector<8x128xf32>
    %cst_29 = arith.constant 0.000000e+00 : f32
    %42 = vector.broadcast %cst_29 : f32 to vector<8x128xf32>
    %43 = arith.maximumf %41, %42 : vector<8x128xf32>
    %44 = arith.truncf %43 : vector<8x128xf32> to vector<8x128xbf16>
    %c0_30 = arith.constant 0 : index
    %c0_31 = arith.constant 0 : index
    %45 = vector.load %arg8[%c0_30, %c0_31] : memref<128x128xbf16, #tpu.memory_space<vmem>>, vector<128x128xbf16>
    %cst_32 = arith.constant dense<0.000000e+00> : vector<8x128xf32>
    %46 = tpu.matmul %44, %45, %cst_32 {dimension_numbers = #tpu.dot_dimension_numbers<[1], [0], [0], [1], [0, 0, 1, 1], [], []>} : vector<8x128xbf16>, vector<128x128xbf16>, vector<8x128xf32> -> vector<8x128xf32>
    %47 = vector.broadcast %5 : vector<1x128xf32> to vector<8x128xf32>
    %48 = arith.addf %46, %47 : vector<8x128xf32>
    %c0_33 = arith.constant 0 : index
    %c0_34 = arith.constant 0 : index
    %49 = vector.load %arg11[%c0_33, %c0_34] : memref<8x128xf32, #tpu.memory_space<vmem>>, vector<8x128xf32>
    tpu.vector_store %arg11[%c0_33, %c0_34], %48 {strides = array<i32>} : memref<8x128xf32, #tpu.memory_space<vmem>>, vector<8x128xf32>,
    return
  }
  func.func @transform_0(%arg0: i32) -> (i32, i32) {
    %c0_i32 = arith.constant 0 : i32
    %c0_i32_0 = arith.constant 0 : i32
    return %arg0, %c0_i32 : i32, i32
  }
  func.func @transform_1(%arg0: i32) -> (i32, i32) {
    %c0_i32 = arith.constant 0 : i32
    %c0_i32_0 = arith.constant 0 : i32
    %c0_i32_1 = arith.constant 0 : i32
    return %c0_i32, %c0_i32_0 : i32, i32
  }
  func.func @transform_2(%arg0: i32) -> (i32, i32) {
    %c0_i32 = arith.constant 0 : i32
    %c0_i32_0 = arith.constant 0 : i32
    %c0_i32_1 = arith.constant 0 : i32
    return %c0_i32, %c0_i32_0 : i32, i32
  }
  func.func @transform_3(%arg0: i32) -> (i32, i32) {
    %c0_i32 = arith.constant 0 : i32
    %c0_i32_0 = arith.constant 0 : i32
    %c0_i32_1 = arith.constant 0 : i32
    return %c0_i32, %c0_i32_0 : i32, i32
  }
  func.func @transform_4(%arg0: i32) -> (i32, i32) {
    %c0_i32 = arith.constant 0 : i32
    %c0_i32_0 = arith.constant 0 : i32
    %c0_i32_1 = arith.constant 0 : i32
    return %c0_i32, %c0_i32_0 : i32, i32
  }
  func.func @transform_5(%arg0: i32) -> (i32, i32) {
    %c0_i32 = arith.constant 0 : i32
    %c0_i32_0 = arith.constant 0 : i32
    %c0_i32_1 = arith.constant 0 : i32
    return %c0_i32, %c0_i32_0 : i32, i32
  }
  func.func @transform_6(%arg0: i32) -> (i32, i32) {
    %c0_i32 = arith.constant 0 : i32
    %c0_i32_0 = arith.constant 0 : i32
    %c0_i32_1 = arith.constant 0 : i32
    return %c0_i32, %c0_i32_0 : i32, i32
  }
  func.func @transform_7(%arg0: i32) -> (i32, i32) {
    %c0_i32 = arith.constant 0 : i32
    %c0_i32_0 = arith.constant 0 : i32
    %c0_i32_1 = arith.constant 0 : i32
    return %c0_i32, %c0_i32_0 : i32, i32
  }
  func.func @transform_8(%arg0: i32) -> (i32, i32) {
    %c0_i32 = arith.constant 0 : i32
    %c0_i32_0 = arith.constant 0 : i32
    %c0_i32_1 = arith.constant 0 : i32
    return %c0_i32, %c0_i32_0 : i32, i32
  }
  func.func @transform_9(%arg0: i32) -> (i32, i32) {
    %c0_i32 = arith.constant 0 : i32
    %c0_i32_0 = arith.constant 0 : i32
    return %arg0, %c0_i32 : i32, i32
  }
  func.func @transform_10(%arg0: i32) -> (i32, i32) {
    %c0_i32 = arith.constant 0 : i32
    %c0_i32_0 = arith.constant 0 : i32
    return %arg0, %c0_i32 : i32, i32
  }
}

</mosaic_0001>

<llo_original>
// kernel: tpu_custom_call.1
$region0: #{tpu_custom_call.1}
  #allocation0 [shape = 'u32[]', space=smem, size = 0x4, offset = 0x4, fixed_abs, tag = 'smem constant byte address 0x4 - core index']
  #allocation1 [shape = 'u32[144,128]{1,0:T(1,128)}', space=vmem, size = 0x12000, scoped, tag = 'internal scratch']
  %s0 = inlined_call_operand.vmem [shape: bf16[256,8], index: 0, kind: input, shape index: {}]
  %s1 = inlined_call_operand.hbm [shape: bf16[64,64], index: 1, kind: input, shape index: {}]
  %s2 = inlined_call_operand.hbm [shape: bf16[8,64], index: 2, kind: input, shape index: {}]
  %s3 = inlined_call_operand.hbm [shape: bf16[8,256], index: 3, kind: input, shape index: {}]
  %s4 = inlined_call_operand.hbm [shape: bf16[256,256], index: 4, kind: input, shape index: {}]
  %s5 = inlined_call_operand.vmem [shape: bf16[128,128], index: 5, kind: input, shape index: {}]
  %s6 = inlined_call_operand.vmem [shape: bf16[128,128], index: 6, kind: input, shape index: {}]
  %s7 = inlined_call_operand.hbm [shape: bf16[128,128], index: 7, kind: input, shape index: {}]
  %s8 = inlined_call_operand.vmem [shape: f32[8,256], index: 8, kind: input, shape index: {}]
  %s9 = inlined_call_operand.hbm [shape: bf16[256,128], index: 9, kind: output, shape index: {0}]
  %s10 = inlined_call_operand.hbm [shape: f32[32,128], index: 10, kind: output, shape index: {1}]
  %11 = xla_tuple %s9, %s10
  %s12 = sld [smem:[#allocation0]]
  $region97: #{tpu_custom_call.1} parent=0
    _
  %s14 = ssub.s32 1, %s12
  %s15 = scalar_select 0, %s14, %s12
  $region1: #{tpu_custom_call.1} parent=0
    #allocation2 [shape = 'u8[16384]{0}', space=vmem, size = 0x4000, scoped, tag = 'input window, operand 1, single buffered']
    #allocation3 [shape = 's32[2]{0}', space=sflag, size = 0x8, scoped, tag = 'scoped memory for tpu_custom_call.1']
    #allocation4 [shape = 's32[2]{0}', space=sflag, size = 0x8, scoped, tag = 'scoped memory for tpu_custom_call.1']
    #allocation5 [shape = 'u8[2048]{0}', space=vmem, size = 0x800, scoped, tag = 'input window, operand 2, single buffered']
    #allocation6 [shape = 's32[1]{0}', space=sflag, size = 0x4, scoped, tag = 'scoped memory for tpu_custom_call.1']
    #allocation7 [shape = 'u8[4096]{0}', space=vmem, size = 0x1000, scoped, tag = 'input window, operand 3, single buffered']
    #allocation8 [shape = 'u8[131072]{0}', space=vmem, size = 0x20000, scoped, tag = 'input window, operand 4, single buffered']
    #allocation9 [shape = 's32[1]{0}', space=sflag, size = 0x4, scoped, tag = 'scoped memory for tpu_custom_call.1']
    #allocation10 [shape = 'u8[32768]{0}', space=vmem, size = 0x8000, scoped, tag = 'input window, operand 7, single buffered']
    #allocation11 [shape = 'u8[32768]{0}', space=vmem, size = 0x8000, scoped, tag = 'output window, operand 0']
    #allocation12 [shape = 'u8[8192]{0}', space=vmem, size = 0x2000, scoped, tag = 'output window, operand 1']
    #allocation13 [shape = 's32[2]{0}', space=sflag, size = 0x8, scoped, tag = 'scoped memory for tpu_custom_call.1']
    %16 = vsyncpa [#allocation3], 0
    %17 = vsyncpa [#allocation6], 0
    %18 = vsyncpa [#allocation9], 0
    %19 = vsyncpa [#allocation4], 0
    %s20 = scalar_lea.sflag [#allocation4], 1
    %21 = vsyncpa %s20, 0
    %22 = vsyncpa [#allocation13], 0
    %s23 = scalar_lea.sflag [#allocation13], 1
    %24 = vsyncpa %s23, 0
    loop: start=0, step=1, limit=6
    $region2: #{tpu_custom_call.1} parent=1 // loop_pre_header
      _
    $region3: #{tpu_custom_call.1} parent=1 // loop_header
      %s26 = sphi 0, %s30
      %p27 = scmp.ge.s32.totalorder %s26, 6
      %s36 = sphi 0, %s38
      %s39 = sphi 0, %s36
      %s40 = sphi 0, %s39
      %s56 = sphi 0, %s40
      %s60 = sphi 0, %s60
      %s62 = sphi 0, %s60
      %s63 = sphi 0, %s62
      %s77 = sphi 0, %s63
      %s81 = sphi 0, %s81
      %s83 = sphi 0, %s81
      %s84 = sphi 0, %s83
      %s98 = sphi 0, %s84
      %s102 = sphi 0, %s102
      %s104 = sphi 0, %s102
      %s105 = sphi 0, %s104
      %s119 = sphi 0, %s105
      %s123 = sphi 0, %s123
      %s125 = sphi 0, %s123
      %s126 = sphi 0, %s125
      %s140 = sphi 0, %s126
      %s144 = sphi 0, %s144
      %s146 = sphi 0, %s144
      %s147 = sphi 0, %s146
      %s161 = sphi 0, %s147
      %s165 = sphi 0, %s165
      %s167 = sphi 0, %s165
      %s168 = sphi 0, %s167
      %s182 = sphi 0, %s168
      %s186 = sphi 0, %s186
      %s188 = sphi 0, %s186
      %s189 = sphi 0, %s188
      %s203 = sphi 0, %s189
      %s207 = sphi 0, %s207
      %s209 = sphi 0, %s207
      %s210 = sphi 0, %s209
      %s224 = sphi 0, %s210
      %s230 = sphi 0, %s232
      %s233 = sphi 0, %s230
      %s234 = sphi 0, %s233
      %s250 = sphi 0, %s234
      %s256 = sphi 0, %s258
      %s259 = sphi 0, %s256
      %s260 = sphi 0, %s259
      %s276 = sphi 0, %s260
    $region4: #{tpu_custom_call.1} parent=1 // loop_header_branch
      %29 = sbr.rel (%p27) target = $region8
    $region5: #{tpu_custom_call.1} parent=1 // loop_body
      %s31 = ssub.s32 %s26, 1
      %s32 = ssub.s32 %s26, 2
      %s33 = sadd.s32 %s26, 1
      %s34 = ssub.s32 %s26, %s33
      %p35 = scmp.eq.s32.totalorder %s34, 0
      %s37 = sadd.s32 %s36, 1
      %s38 = scalar_select %p35, %s36, %s37
      %p41 = pneg %p35
      %p42 = scmp.eq.s32.totalorder %s26, 3
      %p43 = por %p41, %p42
      %p44 = scmp.ne.s32.totalorder %s36, %s39
      %p45 = scmp.eq.s32.totalorder %s26, 0
      %p46 = por %p44, %p45
      %p47 = scmp.ne.s32.totalorder %s36, %s39
      %p48 = scmp.eq.s32.totalorder %s31, 3
      %p49 = por %p47, %p48
      %p50 = scmp.ne.s32.totalorder %s39, %s40
      %p51 = scmp.eq.s32.totalorder %s31, 0
      %p52 = por %p50, %p51
      %p53 = scmp.ne.s32.totalorder %s39, %s40
      %p54 = scmp.eq.s32.totalorder %s32, 3
      %p55 = por %p53, %p54
      %p57 = scmp.ne.s32.totalorder %s40, %s56
      %p58 = scmp.eq.s32.totalorder %s32, 0
      %p59 = por %p57, %p58
      %s61 = sadd.s32 %s60, 1
      %p64 = scmp.eq.s32.totalorder %s26, 3
      %p65 = scmp.ne.s32.totalorder %s60, %s62
      %p66 = scmp.eq.s32.totalorder %s26, 0
      %p67 = por %p65, %p66
      %p68 = scmp.ne.s32.totalorder %s60, %s62
      %p69 = scmp.eq.s32.totalorder %s31, 3
      %p70 = por %p68, %p69
      %p71 = scmp.ne.s32.totalorder %s62, %s63
      %p72 = scmp.eq.s32.totalorder %s31, 0
      %p73 = por %p71, %p72
      %p74 = scmp.ne.s32.totalorder %s62, %s63
      %p75 = scmp.eq.s32.totalorder %s32, 3
      %p76 = por %p74, %p75
      %p78 = scmp.ne.s32.totalorder %s63, %s77
      %p79 = scmp.eq.s32.totalorder %s32, 0
      %p80 = por %p78, %p79
      %s82 = sadd.s32 %s81, 1
      %p85 = scmp.eq.s32.totalorder %s26, 3
      %p86 = scmp.ne.s32.totalorder %s81, %s83
      %p87 = scmp.eq.s32.totalorder %s26, 0
      %p88 = por %p86, %p87
      %p89 = scmp.ne.s32.totalorder %s81, %s83
      %p90 = scmp.eq.s32.totalorder %s31, 3
      %p91 = por %p89, %p90
      %p92 = scmp.ne.s32.totalorder %s83, %s84
      %p93 = scmp.eq.s32.totalorder %s31, 0
      %p94 = por %p92, %p93
      %p95 = scmp.ne.s32.totalorder %s83, %s84
      %p96 = scmp.eq.s32.totalorder %s32, 3
      %p97 = por %p95, %p96
      %p99 = scmp.ne.s32.totalorder %s84, %s98
      %p100 = scmp.eq.s32.totalorder %s32, 0
      %p101 = por %p99, %p100
      %s103 = sadd.s32 %s102, 1
      %p106 = scmp.eq.s32.totalorder %s26, 3
      %p107 = scmp.ne.s32.totalorder %s102, %s104
      %p108 = scmp.eq.s32.totalorder %s26, 0
      %p109 = por %p107, %p108
      %p110 = scmp.ne.s32.totalorder %s102, %s104
      %p111 = scmp.eq.s32.totalorder %s31, 3
      %p112 = por %p110, %p111
      %p113 = scmp.ne.s32.totalorder %s104, %s105
      %p114 = scmp.eq.s32.totalorder %s31, 0
      %p115 = por %p113, %p114
      %p116 = scmp.ne.s32.totalorder %s104, %s105
      %p117 = scmp.eq.s32.totalorder %s32, 3
      %p118 = por %p116, %p117
      %p120 = scmp.ne.s32.totalorder %s105, %s119
      %p121 = scmp.eq.s32.totalorder %s32, 0
      %p122 = por %p120, %p121
      %s124 = sadd.s32 %s123, 1
      %p127 = scmp.eq.s32.totalorder %s26, 3
      %p128 = scmp.ne.s32.totalorder %s123, %s125
      %p129 = scmp.eq.s32.totalorder %s26, 0
      %p130 = por %p128, %p129
      %p131 = scmp.ne.s32.totalorder %s123, %s125
      %p132 = scmp.eq.s32.totalorder %s31, 3
      %p133 = por %p131, %p132
      %p134 = scmp.ne.s32.totalorder %s125, %s126
      %p135 = scmp.eq.s32.totalorder %s31, 0
      %p136 = por %p134, %p135
      %p137 = scmp.ne.s32.totalorder %s125, %s126
      %p138 = scmp.eq.s32.totalorder %s32, 3
      %p139 = por %p137, %p138
      %p141 = scmp.ne.s32.totalorder %s126, %s140
      %p142 = scmp.eq.s32.totalorder %s32, 0
      %p143 = por %p141, %p142
      %s145 = sadd.s32 %s144, 1
      %p148 = scmp.eq.s32.totalorder %s26, 3
      %p149 = scmp.ne.s32.totalorder %s144, %s146
      %p150 = scmp.eq.s32.totalorder %s26, 0
      %p151 = por %p149, %p150
      %p152 = scmp.ne.s32.totalorder %s144, %s146
      %p153 = scmp.eq.s32.totalorder %s31, 3
      %p154 = por %p152, %p153
      %p155 = scmp.ne.s32.totalorder %s146, %s147
      %p156 = scmp.eq.s32.totalorder %s31, 0
      %p157 = por %p155, %p156
      %p158 = scmp.ne.s32.totalorder %s146, %s147
      %p159 = scmp.eq.s32.totalorder %s32, 3
      %p160 = por %p158, %p159
      %p162 = scmp.ne.s32.totalorder %s147, %s161
      %p163 = scmp.eq.s32.totalorder %s32, 0
      %p164 = por %p162, %p163
      %s166 = sadd.s32 %s165, 1
      %p169 = scmp.eq.s32.totalorder %s26, 3
      %p170 = scmp.ne.s32.totalorder %s165, %s167
      %p171 = scmp.eq.s32.totalorder %s26, 0
      %p172 = por %p170, %p171
      %p173 = scmp.ne.s32.totalorder %s165, %s167
      %p174 = scmp.eq.s32.totalorder %s31, 3
      %p175 = por %p173, %p174
      %p176 = scmp.ne.s32.totalorder %s167, %s168
      %p177 = scmp.eq.s32.totalorder %s31, 0
      %p178 = por %p176, %p177
      %p179 = scmp.ne.s32.totalorder %s167, %s168
      %p180 = scmp.eq.s32.totalorder %s32, 3
      %p181 = por %p179, %p180
      %p183 = scmp.ne.s32.totalorder %s168, %s182
      %p184 = scmp.eq.s32.totalorder %s32, 0
      %p185 = por %p183, %p184
      %s187 = sadd.s32 %s186, 1
      %p190 = scmp.eq.s32.totalorder %s26, 3
      %p191 = scmp.ne.s32.totalorder %s186, %s188
      %p192 = scmp.eq.s32.totalorder %s26, 0
      %p193 = por %p191, %p192
      %p194 = scmp.ne.s32.totalorder %s186, %s188
      %p195 = scmp.eq.s32.totalorder %s31, 3
      %p196 = por %p194, %p195
      %p197 = scmp.ne.s32.totalorder %s188, %s189
      %p198 = scmp.eq.s32.totalorder %s31, 0
      %p199 = por %p197, %p198
      %p200 = scmp.ne.s32.totalorder %s188, %s189
      %p201 = scmp.eq.s32.totalorder %s32, 3
      %p202 = por %p200, %p201
      %p204 = scmp.ne.s32.totalorder %s189, %s203
      %p205 = scmp.eq.s32.totalorder %s32, 0
      %p206 = por %p204, %p205
      %s208 = sadd.s32 %s207, 1
      %p211 = scmp.eq.s32.totalorder %s26, 3
      %p212 = scmp.ne.s32.totalorder %s207, %s209
      %p213 = scmp.eq.s32.totalorder %s26, 0
      %p214 = por %p212, %p213
      %p215 = scmp.ne.s32.totalorder %s207, %s209
      %p216 = scmp.eq.s32.totalorder %s31, 3
      %p217 = por %p215, %p216
      %p218 = scmp.ne.s32.totalorder %s209, %s210
      %p219 = scmp.eq.s32.totalorder %s31, 0
      %p220 = por %p218, %p219
      %p221 = scmp.ne.s32.totalorder %s209, %s210
      %p222 = scmp.eq.s32.totalorder %s32, 3
      %p223 = por %p221, %p222
      %p225 = scmp.ne.s32.totalorder %s210, %s224
      %p226 = scmp.eq.s32.totalorder %s32, 0
      %p227 = por %p225, %p226
      %s228 = ssub.s32 %s26, %s33
      %p229 = scmp.eq.s32.totalorder %s228, 0
      %s231 = sadd.s32 %s230, 1
      %s232 = scalar_select %p229, %s230, %s231
      %p235 = pneg %p229
      %p236 = scmp.eq.s32.totalorder %s26, 3
      %p237 = por %p235, %p236
      %p238 = scmp.ne.s32.totalorder %s230, %s233
      %p239 = scmp.eq.s32.totalorder %s26, 0
      %p240 = por %p238, %p239
      %p241 = scmp.ne.s32.totalorder %s230, %s233
      %p242 = scmp.eq.s32.totalorder %s31, 3
      %p243 = por %p241, %p242
      %p244 = scmp.ne.s32.totalorder %s233, %s234
      %p245 = scmp.eq.s32.totalorder %s31, 0
      %p246 = por %p244, %p245
      %p247 = scmp.ne.s32.totalorder %s233, %s234
      %p248 = scmp.eq.s32.totalorder %s32, 3
      %p249 = por %p247, %p248
      %p251 = scmp.ne.s32.totalorder %s234, %s250
      %p252 = scmp.eq.s32.totalorder %s32, 0
      %p253 = por %p251, %p252
      %s254 = ssub.s32 %s26, %s33
      %p255 = scmp.eq.s32.totalorder %s254, 0
      %s257 = sadd.s32 %s256, 1
      %s258 = scalar_select %p255, %s256, %s257
      %p261 = pneg %p255
      %p262 = scmp.eq.s32.totalorder %s26, 3
      %p263 = por %p261, %p262
      %p264 = scmp.ne.s32.totalorder %s256, %s259
      %p265 = scmp.eq.s32.totalorder %s26, 0
      %p266 = por %p264, %p265
      %p267 = scmp.ne.s32.totalorder %s256, %s259
      %p268 = scmp.eq.s32.totalorder %s31, 3
      %p269 = por %p267, %p268
      %p270 = scmp.ne.s32.totalorder %s259, %s260
      %p271 = scmp.eq.s32.totalorder %s31, 0
      %p272 = por %p270, %p271
      %p273 = scmp.ne.s32.totalorder %s259, %s260
      %p274 = scmp.eq.s32.totalorder %s32, 3
      %p275 = por %p273, %p274
      %p277 = scmp.ne.s32.totalorder %s260, %s276
      %p278 = scmp.eq.s32.totalorder %s32, 0
      %p279 = por %p277, %p278
      %p280 = scmp.le.s32.totalorder 1, %s26
      %p281 = scmp.lt.s32.totalorder %s26, 5
      %p282 = pnand %p280, %p281
      %p283 = pneg %p282
      // Predicated region
      $region9: #{tpu_custom_call.1} parent=5 // pred_check
        _
      $region10: #{tpu_custom_call.1} parent=5 // pred_check_branch
        %285 = sbr.rel (%p282) target = $region12
      $region11: #{tpu_custom_call.1} parent=5 // pred_region
        %s286 = ssub.s32 %s26, 1
        // Predicated region
        $region13: #{tpu_custom_call.1} parent=11 // pred_check
          %p287 = pneg %p73
        $region14: #{tpu_custom_call.1} parent=11 // pred_check_branch
          %289 = sbr.rel (%p287) target = $region16
        $region15: #{tpu_custom_call.1} parent=11 // pred_region
          %s291 = ssub.s32 512, 512
          %292 = vsyncadd [#allocation3], %s291
          %s293 = sshll.u32 [#allocation2], 4
          %s294 = int_to_ptr.vmem [resolvable:$true] %s293
          %299 = dma.hbm_to_vmem [thread:$0]  %s1, 512, %s294, [#allocation3], 64, 64, 4
        $region16: #{tpu_custom_call.1} parent=11 // pred_fallthru
          _
        // Predicated region
        $region17: #{tpu_custom_call.1} parent=11 // pred_check
          %p300 = pneg %p94
        $region18: #{tpu_custom_call.1} parent=11 // pred_check_branch
          %302 = sbr.rel (%p300) target = $region20
        $region19: #{tpu_custom_call.1} parent=11 // pred_region
          %s304 = ssub.s32 64, 64
          %305 = vsyncadd [#allocation6], %s304
          %s307 = sshll.u32 [#allocation5], 4
          %s308 = int_to_ptr.vmem [resolvable:$true] %s307
          %310 = dma.hbm_to_vmem [thread:$0]  %s2, 64, %s308, [#allocation6]
        $region20: #{tpu_custom_call.1} parent=11 // pred_fallthru
          _
        // Predicated region
        $region21: #{tpu_custom_call.1} parent=11 // pred_check
          %p311 = pneg %p115
        $region22: #{tpu_custom_call.1} parent=11 // pred_check_branch
          %313 = sbr.rel (%p311) target = $region24
        $region23: #{tpu_custom_call.1} parent=11 // pred_region
          %s315 = ssub.s32 128, 128
          %316 = vsyncadd [#allocation6], %s315
          %s318 = sshll.u32 [#allocation7], 4
          %s319 = int_to_ptr.vmem [resolvable:$true] %s318
          %321 = dma.hbm_to_vmem [thread:$0]  %s3, 128, %s319, [#allocation6]
        $region24: #{tpu_custom_call.1} parent=11 // pred_fallthru
          _
        // Predicated region
        $region25: #{tpu_custom_call.1} parent=11 // pred_check
          %p322 = pneg %p136
        $region26: #{tpu_custom_call.1} parent=11 // pred_check_branch
          %324 = sbr.rel (%p322) target = $region28
        $region27: #{tpu_custom_call.1} parent=11 // pred_region
          %s326 = ssub.s32 4096, 4096
          %327 = vsyncadd [#allocation9], %s326
          %s328 = sshll.u32 [#allocation8], 4
          %s329 = int_to_ptr.vmem [resolvable:$true] %s328
          %334 = dma.hbm_to_vmem [thread:$0]  %s4, 4096, %s329, [#allocation9], 128, 128, 8
        $region28: #{tpu_custom_call.1} parent=11 // pred_fallthru
          _
        // Predicated region
        $region29: #{tpu_custom_call.1} parent=11 // pred_check
          %p335 = pneg %p157
        $region30: #{tpu_custom_call.1} parent=11 // pred_check_branch
          %337 = sbr.rel (%p335) target = $region32
        $region31: #{tpu_custom_call.1} parent=11 // pred_region
          _
        $region32: #{tpu_custom_call.1} parent=11 // pred_fallthru
          _
        // Predicated region
        $region33: #{tpu_custom_call.1} parent=11 // pred_check
          %p338 = pneg %p178
        $region34: #{tpu_custom_call.1} parent=11 // pred_check_branch
          %340 = sbr.rel (%p338) target = $region36
        $region35: #{tpu_custom_call.1} parent=11 // pred_region
          _
        $region36: #{tpu_custom_call.1} parent=11 // pred_fallthru
          _
        // Predicated region
        $region37: #{tpu_custom_call.1} parent=11 // pred_check
          %p341 = pneg %p199
        $region38: #{tpu_custom_call.1} parent=11 // pred_check_branch
          %343 = sbr.rel (%p341) target = $region40
        $region39: #{tpu_custom_call.1} parent=11 // pred_region
          %s345 = ssub.s32 1024, 1024
          %346 = vsyncadd [#allocation9], %s345
          %s347 = sshll.u32 [#allocation10], 4
          %s348 = int_to_ptr.vmem [resolvable:$true] %s347
          %353 = dma.hbm_to_vmem [thread:$0]  %s7, 1024, %s348, [#allocation9], 64, 64, 4
        $region40: #{tpu_custom_call.1} parent=11 // pred_fallthru
          _
        // Predicated region
        $region41: #{tpu_custom_call.1} parent=11 // pred_check
          %p354 = pneg %p220
        $region42: #{tpu_custom_call.1} parent=11 // pred_check_branch
          %356 = sbr.rel (%p354) target = $region44
        $region43: #{tpu_custom_call.1} parent=11 // pred_region
          _
        $region44: #{tpu_custom_call.1} parent=11 // pred_fallthru
          _
      $region12: #{tpu_custom_call.1} parent=5 // pred_fallthru
        _
      %p357 = scmp.lt.s32.totalorder %s26, 4
      // Predicated region
      $region45: #{tpu_custom_call.1} parent=5 // pred_check
        %p358 = pneg %p357
      $region46: #{tpu_custom_call.1} parent=5 // pred_check_branch
        %360 = sbr.rel (%p358) target = $region48
      $region47: #{tpu_custom_call.1} parent=5 // pred_region
        // Predicated region
        $region49: #{tpu_custom_call.1} parent=47 // pred_check
          %p361 = pneg %p46
        $region50: #{tpu_custom_call.1} parent=47 // pred_check_branch
          %363 = sbr.rel (%p361) target = $region52
        $region51: #{tpu_custom_call.1} parent=47 // pred_region
          %s364 = smul.u32 8, %s26
          %p365 = scmp.lt.s32.totalorder %s364, 31
          %s366 = scalar_select %p365, %s364, 31
          %s367 = smul.addr %s366, 4
          %s368 = scalar_lea.vmem %s0, %s367
          %s369 = smul.u32 8, %s26
        $region52: #{tpu_custom_call.1} parent=47 // pred_fallthru
          _
      $region48: #{tpu_custom_call.1} parent=5 // pred_fallthru
        _
      %p370 = scmp.le.s32.totalorder 1, %s26
      %p371 = scmp.lt.s32.totalorder %s26, 5
      %p372 = pnand %p370, %p371
      %p373 = pneg %p372
      // Predicated region
      $region53: #{tpu_custom_call.1} parent=5 // pred_check
        _
      $region54: #{tpu_custom_call.1} parent=5 // pred_check_branch
        %375 = sbr.rel (%p372) target = $region56
      $region55: #{tpu_custom_call.1} parent=5 // pred_region
        %s376 = ssub.s32 %s26, 1
        // Predicated region
        $region57: #{tpu_custom_call.1} parent=55 // pred_check
          %p377 = pneg %p73
        $region58: #{tpu_custom_call.1} parent=55 // pred_check_branch
          %379 = sbr.rel (%p377) target = $region60
        $region59: #{tpu_custom_call.1} parent=55 // pred_region
          %380 = dma.done [#allocation3], 512
        $region60: #{tpu_custom_call.1} parent=55 // pred_fallthru
          _
        // Predicated region
        $region61: #{tpu_custom_call.1} parent=55 // pred_check
          %p381 = pneg %p94
        $region62: #{tpu_custom_call.1} parent=55 // pred_check_branch
          %383 = sbr.rel (%p381) target = $region64
        $region63: #{tpu_custom_call.1} parent=55 // pred_region
          %384 = dma.done [#allocation6], 64
        $region64: #{tpu_custom_call.1} parent=55 // pred_fallthru
          _
        // Predicated region
        $region65: #{tpu_custom_call.1} parent=55 // pred_check
          %p385 = pneg %p115
        $region66: #{tpu_custom_call.1} parent=55 // pred_check_branch
          %387 = sbr.rel (%p385) target = $region68
        $region67: #{tpu_custom_call.1} parent=55 // pred_region
          %388 = dma.done [#allocation6], 128
        $region68: #{tpu_custom_call.1} parent=55 // pred_fallthru
          _
        // Predicated region
        $region69: #{tpu_custom_call.1} parent=55 // pred_check
          %p389 = pneg %p136
        $region70: #{tpu_custom_call.1} parent=55 // pred_check_branch
          %391 = sbr.rel (%p389) target = $region72
        $region71: #{tpu_custom_call.1} parent=55 // pred_region
          %392 = dma.done [#allocation9], 4096
        $region72: #{tpu_custom_call.1} parent=55 // pred_fallthru
          _
        // Predicated region
        $region73: #{tpu_custom_call.1} parent=55 // pred_check
          %p393 = pneg %p199
        $region74: #{tpu_custom_call.1} parent=55 // pred_check_branch
          %395 = sbr.rel (%p393) target = $region76
        $region75: #{tpu_custom_call.1} parent=55 // pred_region
          %396 = dma.done [#allocation9], 1024
        $region76: #{tpu_custom_call.1} parent=55 // pred_fallthru
          _
        %s397 = smul.u32 8, %s31
        %p398 = scmp.lt.s32.totalorder %s397, 31
        %s399 = scalar_select %p398, %s397, 31
        %s400 = smul.addr %s399, 4
        %s401 = scalar_lea.vmem %s0, %s400
        %p402 = pneg %p52
        %p403 = pneg %p49
        %p404 = pneg %p73
        %p405 = pneg %p70
        %p406 = pneg %p94
        %p407 = pneg %p91
        %p408 = pneg %p115
        %p409 = pneg %p112
        %p410 = pneg %p136
        %p411 = pneg %p133
        %p412 = pneg %p157
        %p413 = pneg %p154
        %p414 = pneg %p178
        %p415 = pneg %p175
        %p416 = pneg %p199
        %p417 = pneg %p196
        %p418 = pneg %p220
        %p419 = pneg %p217
        %p420 = pneg %p246
        %p421 = pneg %p243
        %s422 = sand.u32 %s233, 1
        %s423 = scalar_lea.sflag [#allocation4], %s422
        %s424 = sand.u32 %s233, 1
        %s425 = smul.addr %s424, 32
        %s426 = scalar_lea.vmem [#allocation11], %s425
        %p427 = pneg %p272
        %p428 = pneg %p269
        %s429 = sand.u32 %s259, 1
        %s430 = scalar_lea.sflag [#allocation13], %s429
        %s431 = sand.u32 %s259, 1
        %s432 = smul.addr %s431, 8
        %s433 = scalar_lea.vmem [#allocation12], %s432
        %s434 = smul.u32 8, %s31
        %p435 = scmp.lt.s32.totalorder %s434, 31
        %s436 = scalar_select %p435, %s434, 31
        %s437 = smul.addr %s436, 4
        %s438 = scalar_lea.vmem %s0, %s437
        %s439 = smul.u32 8, %s31
        %s440 = smul.u32 8, %s31
        %v442 = vld [vmem:[#allocation2] sm:$0xf]
        %v443 = vld [vmem:[#allocation2 + $0x4] sm:$0xf]
        %v444 = vld [vmem:[#allocation2 + $0x8] sm:$0xf]
        %v445 = vld [vmem:[#allocation2 + $0xc] sm:$0xf]
        %v446 = vld [vmem:[#allocation2 + $0x10] sm:$0xf]
        %v447 = vld [vmem:[#allocation2 + $0x14] sm:$0xf]
        %v448 = vld [vmem:[#allocation2 + $0x18] sm:$0xf]
        %v449 = vld [vmem:[#allocation2 + $0x1c] sm:$0xf]
        %v450 = vld [vmem:[%s8] ss:$8 sm:$0x3]
        %s451 = scalar_lea.vmem %s8, 1
        %v452 = vld [vmem:[%s451] ss:$8 sm:$0x3]
        %v453 = vld [vmem:[%s8 + $0x2] ss:$0 sm:$0xff]
        %v454 = vld [vmem:[%s8 + $0x3] ss:$0 sm:$0xff]
        %v455 = vld [vmem:[%s8 + $0x4] ss:$0 sm:$0xff]
        %v456 = vld [vmem:[%s438] sm:$0xf]
        %v457 = vld [vmem:[%s438 + $0x4] sm:$0xf]
        %v458 = vld [vmem:[%s438 + $0x8] sm:$0xf]
        %v459 = vld [vmem:[%s438 + $0xc] sm:$0xf]
        %v460 = vld [vmem:[%s438 + $0x10] sm:$0xf]
        %v461 = vld [vmem:[%s438 + $0x14] sm:$0xf]
        %v462 = vld [vmem:[%s438 + $0x18] sm:$0xf]
        %v463 = vld [vmem:[%s438 + $0x1c] sm:$0xf]
        %v472 = vunpack.c.l.b16 %v442
        %v473 = vunpack.c.l.b16 %v443
        %v474 = vunpack.c.l.b16 %v444
        %v475 = vunpack.c.l.b16 %v445
        %v476 = vunpack.c.l.b16 %v446
        %v477 = vunpack.c.l.b16 %v447
        %v478 = vunpack.c.l.b16 %v448
        %v479 = vunpack.c.l.b16 %v449
        %v480 = vpack.c.b16 %v473, %v472
        %v481 = vpack.c.b16 %v475, %v474
        %v482 = vpack.c.b16 %v477, %v476
        %v483 = vpack.c.b16 %v479, %v478
        %v492 = vunpack.c.l.b16 %v456
        %v493 = vunpack.c.l.b16 %v457
        %v494 = vunpack.c.l.b16 %v458
        %v495 = vunpack.c.l.b16 %v459
        %v496 = vunpack.c.l.b16 %v460
        %v497 = vunpack.c.l.b16 %v461
        %v498 = vunpack.c.l.b16 %v462
        %v499 = vunpack.c.l.b16 %v463
        %v500 = vpack.c.b16 %v493, %v492
        %v501 = vpack.c.b16 %v495, %v494
        %v502 = vpack.c.b16 %v497, %v496
        %v503 = vpack.c.b16 %v499, %v498
        %vm508 = vcmask 523264
        %v510 = vsel %vm508, %v480, 0
        %v513 = vsel %vm508, %v481, 0
        %v516 = vsel %vm508, %v482, 0
        %v519 = vsel %vm508, %v483, 0
        %521 = vmatprep.subr.bf16.mxu0 0
        %522 = vmatpush1.bf16.msra.mxu0 %v500
        %523 = vmatprep.subr.bf16.mxu0 0
        %524 = vmatpush1.bf16.msra.mxu0 %v501
        %525 = vmatprep.subr.bf16.mxu0 0
        %526 = vmatpush1.bf16.msra.mxu0 %v502
        %527 = vmatprep.subr.bf16.mxu0 0
        %528 = vmatpush1.bf16.msra.mxu0 %v503
        %529 = vmatprep.subr.bf16.mxu0 0
        %530 = vmatpush1.bf16.msra.mxu0 0
        %531 = vmatprep.subr.bf16.mxu0 0
        %532 = vmatpush1.bf16.msra.mxu0 0
        %533 = vmatprep.subr.bf16.mxu0 0
        %534 = vmatpush1.bf16.msra.mxu0 0
        %535 = vmatprep.subr.bf16.mxu0 0
        %536 = vmatpush1.bf16.msra.mxu0 0
        %537 = vmatprep.subr.bf16.mxu0 0
        %538 = vmatpush1.bf16.msra.mxu0 0
        %539 = vmatprep.subr.bf16.mxu0 0
        %540 = vmatpush1.bf16.msra.mxu0 0
        %541 = vmatprep.subr.bf16.mxu0 0
        %542 = vmatpush1.bf16.msra.mxu0 0
        %543 = vmatprep.subr.bf16.mxu0 0
        %544 = vmatpush1.bf16.msra.mxu0 0
        %545 = vmatprep.subr.bf16.mxu0 0
        %546 = vmatpush1.bf16.msra.mxu0 0
        %547 = vmatprep.subr.bf16.mxu0 0
        %548 = vmatpush1.bf16.msra.mxu0 0
        %549 = vmatprep.subr.bf16.mxu0 0
        %550 = vmatpush1.bf16.msra.mxu0 0
        %551 = vmatprep.subr.bf16.mxu0 0
        %552 = vmatpush1.bf16.msra.mxu0 0
        %553 = vmatprep.mubr.bf16.mxu0 0
        %554 = vmatmul.mubr.bf16.gmra.mrb[0].mxu0 %v510
        %v555 = vpop.f32.mrb[0].mxu0
        %v556 = vadd.f32 0.0, %v555
        %v557 = vpop.f32.mrb[0].mxu0
        %v558 = vpop.f32.mrb[0].mxu0
        %v559 = vadd.f32 0.0, %v558
        %v560 = vpop.f32.mrb[0].mxu0
        %561 = vmatprep.mubr.bf16.mxu0 0
        %562 = vmatmul.mubr.bf16.gmra.mrb[0].mxu0 %v513
        %v563 = vpop.f32.mrb[0].mxu0
        %v564 = vadd.f32 0.0, %v563
        %v565 = vpop.f32.mrb[0].mxu0
        %v566 = vpop.f32.mrb[0].mxu0
        %v567 = vadd.f32 0.0, %v566
        %v568 = vpop.f32.mrb[0].mxu0
        %569 = vmatprep.mubr.bf16.mxu0 0
        %570 = vmatmul.mubr.bf16.gmra.mrb[0].mxu0 %v516
        %v571 = vpop.f32.mrb[0].mxu0
        %v572 = vadd.f32 0.0, %v571
        %v573 = vpop.f32.mrb[0].mxu0
        %v574 = vpop.f32.mrb[0].mxu0
        %v575 = vadd.f32 0.0, %v574
        %v576 = vpop.f32.mrb[0].mxu0
        %577 = vmatprep.mubr.bf16.mxu0 0
        %578 = vmatmul.mubr.bf16.gmra.mrb[0].mxu0 %v519
        %v579 = vpop.f32.mrb[0].mxu0
        %v580 = vadd.f32 0.0, %v579
        %v581 = vpop.f32.mrb[0].mxu0
        %v582 = vpop.f32.mrb[0].mxu0
        %v583 = vadd.f32 0.0, %v582
        %v584 = vpop.f32.mrb[0].mxu0
        %585 = vdwg.mxu0
        %v586 = vpack.c.bf16 %v559, %v556
        %v587 = vpack.c.bf16 %v567, %v564
        %v588 = vpack.c.bf16 %v575, %v572
        %v589 = vpack.c.bf16 %v583, %v580
        %v590 = vld [vmem:[#allocation7] sm:$0xff]
        %v592 = vlaneseq
        %v593 = vshrl.u32 %v592, 7
        %v594 = vsub.s32 0, %v593
        %v595 = vrot.slane %v450, %v594
        %v596 = vlaneseq
        %v597 = vshrl.u32 %v596, 7
        %v598 = vsub.s32 1, %v597
        %v599 = vrot.slane %v450, %v598
        %v603 = vunpack.c.l.b16 %v590
        %v604 = vunpack.c.h.b16 %v590
        %v605 = vpack.c.b16 %v603, %v603
        %v606 = vpack.c.b16 %v604, %v604
        %vm607 = vcmask 64512
        %v609 = vsel %vm607, %v586, 0
        %v612 = vsel %vm607, %v587, 0
        %v615 = vsel %vm607, %v588, 0
        %v618 = vsel %vm607, %v589, 0
        %vm620 = vcmask 1043456
        %v622 = vsel %vm620, %v605, 0
        %v625 = vsel %vm620, %v606, 0
        %627 = vmatprep.subr.bf16.mxu0 %v625
        %628 = vmatpush1.bf16.msra.mxu0 %v622
        %629 = vmatprep.subr.bf16.mxu0 0
        %630 = vmatpush1.bf16.msra.mxu0 0
        %631 = vmatprep.subr.bf16.mxu0 0
        %632 = vmatpush1.bf16.msra.mxu0 0
        %633 = vmatprep.subr.bf16.mxu0 0
        %634 = vmatpush1.bf16.msra.mxu0 0
        %635 = vmatprep.subr.bf16.mxu0 0
        %636 = vmatpush1.bf16.msra.mxu0 0
        %637 = vmatprep.subr.bf16.mxu0 0
        %638 = vmatpush1.bf16.msra.mxu0 0
        %639 = vmatprep.subr.bf16.mxu0 0
        %640 = vmatpush1.bf16.msra.mxu0 0
        %641 = vmatprep.subr.bf16.mxu0 0
        %642 = vmatpush1.bf16.msra.mxu0 0
        %643 = vmatprep.subr.bf16.mxu0 0
        %644 = vmatpush1.bf16.msra.mxu0 0
        %645 = vmatprep.subr.bf16.mxu0 0
        %646 = vmatpush1.bf16.msra.mxu0 0
        %647 = vmatprep.subr.bf16.mxu0 0
        %648 = vmatpush1.bf16.msra.mxu0 0
        %649 = vmatprep.subr.bf16.mxu0 0
        %650 = vmatpush1.bf16.msra.mxu0 0
        %651 = vmatprep.subr.bf16.mxu0 0
        %652 = vmatpush1.bf16.msra.mxu0 0
        %653 = vmatprep.subr.bf16.mxu0 0
        %654 = vmatpush1.bf16.msra.mxu0 0
        %655 = vmatprep.subr.bf16.mxu0 0
        %656 = vmatpush1.bf16.msra.mxu0 0
        %657 = vmatprep.subr.bf16.mxu0 0
        %658 = vmatpush1.bf16.msra.mxu0 0
        %659 = vmatprep.mubr.bf16.mxu0 0
        %660 = vmatmul.mubr.bf16.gmra.mrb[0].mxu0 %v609
        %v661 = vpop.f32.mrb[0].mxu0
        %v662 = vadd.f32 %v595, %v661
        %v663 = vpop.f32.mrb[0].mxu0
        %v664 = vadd.f32 %v599, %v663
        %v665 = vpop.f32.mrb[0].mxu0
        %v666 = vadd.f32 %v595, %v665
        %v667 = vpop.f32.mrb[0].mxu0
        %v668 = vadd.f32 %v599, %v667
        %669 = vmatprep.mubr.bf16.mxu0 0
        %670 = vmatmul.mubr.bf16.gmra.mrb[0].mxu0 %v612
        %v671 = vpop.f32.mrb[0].mxu0
        %v672 = vadd.f32 %v595, %v671
        %v673 = vpop.f32.mrb[0].mxu0
        %v674 = vadd.f32 %v599, %v673
        %v675 = vpop.f32.mrb[0].mxu0
        %v676 = vadd.f32 %v595, %v675
        %v677 = vpop.f32.mrb[0].mxu0
        %v678 = vadd.f32 %v599, %v677
        %679 = vmatprep.mubr.bf16.mxu0 0
        %680 = vmatmul.mubr.bf16.gmra.mrb[0].mxu0 %v615
        %v681 = vpop.f32.mrb[0].mxu0
        %v682 = vadd.f32 %v595, %v681
        %v683 = vpop.f32.mrb[0].mxu0
        %v684 = vadd.f32 %v599, %v683
        %v685 = vpop.f32.mrb[0].mxu0
        %v686 = vadd.f32 %v595, %v685
        %v687 = vpop.f32.mrb[0].mxu0
        %v688 = vadd.f32 %v599, %v687
        %689 = vmatprep.mubr.bf16.mxu0 0
        %690 = vmatmul.mubr.bf16.gmra.mrb[0].mxu0 %v618
        %v691 = vpop.f32.mrb[0].mxu0
        %v692 = vadd.f32 %v595, %v691
        %v693 = vpop.f32.mrb[0].mxu0
        %v694 = vadd.f32 %v599, %v693
        %v695 = vpop.f32.mrb[0].mxu0
        %v696 = vadd.f32 %v595, %v695
        %v697 = vpop.f32.mrb[0].mxu0
        %v698 = vadd.f32 %v599, %v697
        %699 = vdwg.mxu0
        %v700 = vmax.f32 %v662, 0.0
        %v701 = vmax.f32 %v664, 0.0
        %v702 = vmax.f32 %v666, 0.0
        %v703 = vmax.f32 %v668, 0.0
        %v704 = vmax.f32 %v672, 0.0
        %v705 = vmax.f32 %v674, 0.0
        %v706 = vmax.f32 %v676, 0.0
        %v707 = vmax.f32 %v678, 0.0
        %v708 = vmax.f32 %v682, 0.0
        %v709 = vmax.f32 %v684, 0.0
        %v710 = vmax.f32 %v686, 0.0
        %v711 = vmax.f32 %v688, 0.0
        %v712 = vmax.f32 %v692, 0.0
        %v713 = vmax.f32 %v694, 0.0
        %v714 = vmax.f32 %v696, 0.0
        %v715 = vmax.f32 %v698, 0.0
        %v716 = vpack.c.bf16 %v702, %v700
        %v717 = vpack.c.bf16 %v703, %v701
        %v718 = vpack.c.bf16 %v706, %v704
        %v719 = vpack.c.bf16 %v707, %v705
        %v720 = vpack.c.bf16 %v710, %v708
        %v721 = vpack.c.bf16 %v711, %v709
        %v722 = vpack.c.bf16 %v714, %v712
        %v723 = vpack.c.bf16 %v715, %v713
        %v724 = vld [vmem:[#allocation8] sm:$0xff]
        %v725 = vld [vmem:[#allocation8 + $0x8] sm:$0xff]
        %v726 = vld [vmem:[#allocation8 + $0x10] sm:$0xff]
        %v727 = vld [vmem:[#allocation8 + $0x18] sm:$0xff]
        %v728 = vld [vmem:[#allocation8 + $0x20] sm:$0xff]
        %v729 = vld [vmem:[#allocation8 + $0x28] sm:$0xff]
        %v730 = vld [vmem:[#allocation8 + $0x30] sm:$0xff]
        %v731 = vld [vmem:[#allocation8 + $0x38] sm:$0xff]
        %v732 = vld [vmem:[#allocation8 + $0x40] sm:$0xff]
        %v733 = vld [vmem:[#allocation8 + $0x48] sm:$0xff]
        %v734 = vld [vmem:[#allocation8 + $0x50] sm:$0xff]
        %v735 = vld [vmem:[#allocation8 + $0x58] sm:$0xff]
        %v736 = vld [vmem:[#allocation8 + $0x60] sm:$0xff]
        %v737 = vld [vmem:[#allocation8 + $0x68] sm:$0xff]
        %v738 = vld [vmem:[#allocation8 + $0x70] sm:$0xff]
        %v739 = vld [vmem:[#allocation8 + $0x78] sm:$0xff]
        %v740 = vld [vmem:[#allocation8 + $0x80] sm:$0xff]
        %v741 = vld [vmem:[#allocation8 + $0x88] sm:$0xff]
        %v742 = vld [vmem:[#allocation8 + $0x90] sm:$0xff]
        %v743 = vld [vmem:[#allocation8 + $0x98] sm:$0xff]
        %v744 = vld [vmem:[#allocation8 + $0xa0] sm:$0xff]
        %v745 = vld [vmem:[#allocation8 + $0xa8] sm:$0xff]
        %v746 = vld [vmem:[#allocation8 + $0xb0] sm:$0xff]
        %v747 = vld [vmem:[#allocation8 + $0xb8] sm:$0xff]
        %v748 = vld [vmem:[#allocation8 + $0xc0] sm:$0xff]
        %v749 = vld [vmem:[#allocation8 + $0xc8] sm:$0xff]
        %v750 = vld [vmem:[#allocation8 + $0xd0] sm:$0xff]
        %v751 = vld [vmem:[#allocation8 + $0xd8] sm:$0xff]
        %v752 = vld [vmem:[#allocation8 + $0xe0] sm:$0xff]
        %v753 = vld [vmem:[#allocation8 + $0xe8] sm:$0xff]
        %v754 = vld [vmem:[#allocation8 + $0xf0] sm:$0xff]
        %v755 = vld [vmem:[#allocation8 + $0xf8] sm:$0xff]
        %v788 = vunpack.c.l.b16 %v724
        %v789 = vunpack.c.h.b16 %v724
        %v790 = vunpack.c.l.b16 %v725
        %v791 = vunpack.c.h.b16 %v725
        %v792 = vunpack.c.l.b16 %v726
        %v793 = vunpack.c.h.b16 %v726
        %v794 = vunpack.c.l.b16 %v727
        %v795 = vunpack.c.h.b16 %v727
        %v796 = vunpack.c.l.b16 %v728
        %v797 = vunpack.c.h.b16 %v728
        %v798 = vunpack.c.l.b16 %v729
        %v799 = vunpack.c.h.b16 %v729
        %v800 = vunpack.c.l.b16 %v730
        %v801 = vunpack.c.h.b16 %v730
        %v802 = vunpack.c.l.b16 %v731
        %v803 = vunpack.c.h.b16 %v731
        %v804 = vunpack.c.l.b16 %v732
        %v805 = vunpack.c.h.b16 %v732
        %v806 = vunpack.c.l.b16 %v733
        %v807 = vunpack.c.h.b16 %v733
        %v808 = vunpack.c.l.b16 %v734
        %v809 = vunpack.c.h.b16 %v734
        %v810 = vunpack.c.l.b16 %v735
        %v811 = vunpack.c.h.b16 %v735
        %v812 = vunpack.c.l.b16 %v736
        %v813 = vunpack.c.h.b16 %v736
        %v814 = vunpack.c.l.b16 %v737
        %v815 = vunpack.c.h.b16 %v737
        %v816 = vunpack.c.l.b16 %v738
        %v817 = vunpack.c.h.b16 %v738
        %v818 = vunpack.c.l.b16 %v739
        %v819 = vunpack.c.h.b16 %v739
        %v820 = vunpack.c.l.b16 %v740
        %v821 = vunpack.c.h.b16 %v740
        %v822 = vunpack.c.l.b16 %v741
        %v823 = vunpack.c.h.b16 %v741
        %v824 = vunpack.c.l.b16 %v742
        %v825 = vunpack.c.h.b16 %v742
        %v826 = vunpack.c.l.b16 %v743
        %v827 = vunpack.c.h.b16 %v743
        %v828 = vunpack.c.l.b16 %v744
        %v829 = vunpack.c.h.b16 %v744
        %v830 = vunpack.c.l.b16 %v745
        %v831 = vunpack.c.h.b16 %v745
        %v832 = vunpack.c.l.b16 %v746
        %v833 = vunpack.c.h.b16 %v746
        %v834 = vunpack.c.l.b16 %v747
        %v835 = vunpack.c.h.b16 %v747
        %v836 = vunpack.c.l.b16 %v748
        %v837 = vunpack.c.h.b16 %v748
        %v838 = vunpack.c.l.b16 %v749
        %v839 = vunpack.c.h.b16 %v749
        %v840 = vunpack.c.l.b16 %v750
        %v841 = vunpack.c.h.b16 %v750
        %v842 = vunpack.c.l.b16 %v751
        %v843 = vunpack.c.h.b16 %v751
        %v844 = vunpack.c.l.b16 %v752
        %v845 = vunpack.c.h.b16 %v752
        %v846 = vunpack.c.l.b16 %v753
        %v847 = vunpack.c.h.b16 %v753
        %v848 = vunpack.c.l.b16 %v754
        %v849 = vunpack.c.h.b16 %v754
        %v850 = vunpack.c.l.b16 %v755
        %v851 = vunpack.c.h.b16 %v755
        %v852 = vpack.c.b16 %v790, %v788
        %v853 = vpack.c.b16 %v791, %v789
        %v854 = vpack.c.b16 %v794, %v792
        %v855 = vpack.c.b16 %v795, %v793
        %v856 = vpack.c.b16 %v798, %v796
        %v857 = vpack.c.b16 %v799, %v797
        %v858 = vpack.c.b16 %v802, %v800
        %v859 = vpack.c.b16 %v803, %v801
        %v860 = vpack.c.b16 %v806, %v804
        %v861 = vpack.c.b16 %v807, %v805
        %v862 = vpack.c.b16 %v810, %v808
        %v863 = vpack.c.b16 %v811, %v809
        %v864 = vpack.c.b16 %v814, %v812
        %v865 = vpack.c.b16 %v815, %v813
        %v866 = vpack.c.b16 %v818, %v816
        %v867 = vpack.c.b16 %v819, %v817
        %v868 = vpack.c.b16 %v822, %v820
        %v869 = vpack.c.b16 %v823, %v821
        %v870 = vpack.c.b16 %v826, %v824
        %v871 = vpack.c.b16 %v827, %v825
        %v872 = vpack.c.b16 %v830, %v828
        %v873 = vpack.c.b16 %v831, %v829
        %v874 = vpack.c.b16 %v834, %v832
        %v875 = vpack.c.b16 %v835, %v833
        %v876 = vpack.c.b16 %v838, %v836
        %v877 = vpack.c.b16 %v839, %v837
        %v878 = vpack.c.b16 %v842, %v840
        %v879 = vpack.c.b16 %v843, %v841
        %v880 = vpack.c.b16 %v846, %v844
        %v881 = vpack.c.b16 %v847, %v845
        %v882 = vpack.c.b16 %v850, %v848
        %v883 = vpack.c.b16 %v851, %v849
        %916 = vmatprep.subr.bf16.mxu0 %v853
        %917 = vmatpush1.bf16.msra.mxu0 %v852
        %918 = vmatprep.subr.bf16.mxu0 %v855
        %919 = vmatpush1.bf16.msra.mxu0 %v854
        %920 = vmatprep.subr.bf16.mxu0 %v857
        %921 = vmatpush1.bf16.msra.mxu0 %v856
        %922 = vmatprep.subr.bf16.mxu0 %v859
        %923 = vmatpush1.bf16.msra.mxu0 %v858
        %924 = vmatprep.subr.bf16.mxu0 %v861
        %925 = vmatpush1.bf16.msra.mxu0 %v860
        %926 = vmatprep.subr.bf16.mxu0 %v863
        %927 = vmatpush1.bf16.msra.mxu0 %v862
        %928 = vmatprep.subr.bf16.mxu0 %v865
        %929 = vmatpush1.bf16.msra.mxu0 %v864
        %930 = vmatprep.subr.bf16.mxu0 %v867
        %931 = vmatpush1.bf16.msra.mxu0 %v866
        %932 = vmatprep.subr.bf16.mxu0 %v869
        %933 = vmatpush1.bf16.msra.mxu0 %v868
        %934 = vmatprep.subr.bf16.mxu0 %v871
        %935 = vmatpush1.bf16.msra.mxu0 %v870
        %936 = vmatprep.subr.bf16.mxu0 %v873
        %937 = vmatpush1.bf16.msra.mxu0 %v872
        %938 = vmatprep.subr.bf16.mxu0 %v875
        %939 = vmatpush1.bf16.msra.mxu0 %v874
        %940 = vmatprep.subr.bf16.mxu0 %v877
        %941 = vmatpush1.bf16.msra.mxu0 %v876
        %942 = vmatprep.subr.bf16.mxu0 %v879
        %943 = vmatpush1.bf16.msra.mxu0 %v878
        %944 = vmatprep.subr.bf16.mxu0 %v881
        %945 = vmatpush1.bf16.msra.mxu0 %v880
        %946 = vmatprep.subr.bf16.mxu0 %v883
        %947 = vmatpush1.bf16.msra.mxu0 %v882
        %948 = vmatprep.mubr.bf16.mxu0 %v717
        %949 = vmatmul.mubr.bf16.gmra.mrb[0].mxu0 %v716
        %v950 = vpop.f32.mrb[0].mxu0
        %v951 = vadd.f32 0.0, %v950
        %v952 = vpop.f32.mrb[0].mxu0
        %v953 = vadd.f32 0.0, %v952
        %v954 = vpop.f32.mrb[0].mxu0
        %v955 = vadd.f32 0.0, %v954
        %v956 = vpop.f32.mrb[0].mxu0
        %v957 = vadd.f32 0.0, %v956
        %958 = vmatprep.mubr.bf16.mxu0 %v719
        %959 = vmatmul.mubr.bf16.gmra.mrb[0].mxu0 %v718
        %v960 = vpop.f32.mrb[0].mxu0
        %v961 = vadd.f32 0.0, %v960
        %v962 = vpop.f32.mrb[0].mxu0
        %v963 = vadd.f32 0.0, %v962
        %v964 = vpop.f32.mrb[0].mxu0
        %v965 = vadd.f32 0.0, %v964
        %v966 = vpop.f32.mrb[0].mxu0
        %v967 = vadd.f32 0.0, %v966
        %968 = vmatprep.mubr.bf16.mxu0 %v721
        %969 = vmatmul.mubr.bf16.gmra.mrb[0].mxu0 %v720
        %v970 = vpop.f32.mrb[0].mxu0
        %v971 = vadd.f32 0.0, %v970
        %v972 = vpop.f32.mrb[0].mxu0
        %v973 = vadd.f32 0.0, %v972
        %v974 = vpop.f32.mrb[0].mxu0
        %v975 = vadd.f32 0.0, %v974
        %v976 = vpop.f32.mrb[0].mxu0
        %v977 = vadd.f32 0.0, %v976
        %978 = vmatprep.mubr.bf16.mxu0 %v723
        %979 = vmatmul.mubr.bf16.gmra.mrb[0].mxu0 %v722
        %v980 = vpop.f32.mrb[0].mxu0
        %v981 = vadd.f32 0.0, %v980
        %v982 = vpop.f32.mrb[0].mxu0
        %v983 = vadd.f32 0.0, %v982
        %v984 = vpop.f32.mrb[0].mxu0
        %v985 = vadd.f32 0.0, %v984
        %v986 = vpop.f32.mrb[0].mxu0
        %v987 = vadd.f32 0.0, %v986
        %988 = vdwg.mxu0
        %v989 = vpack.c.bf16 %v955, %v951
        %v990 = vpack.c.bf16 %v957, %v953
        %v991 = vpack.c.bf16 %v965, %v961
        %v992 = vpack.c.bf16 %v967, %v963
        %v993 = vpack.c.bf16 %v975, %v971
        %v994 = vpack.c.bf16 %v977, %v973
        %v995 = vpack.c.bf16 %v985, %v981
        %v996 = vpack.c.bf16 %v987, %v983
        %v998 = vlaneseq
        %v999 = vshrl.u32 %v998, 7
        %v1000 = vsub.s32 0, %v999
        %v1001 = vrot.slane %v452, %v1000
        %v1002 = vlaneseq
        %v1003 = vshrl.u32 %v1002, 7
        %v1004 = vsub.s32 1, %v1003
        %v1005 = vrot.slane %v452, %v1004
        %1008 = vmatprep.subr.bf16.mxu0 %v990
        %1009 = vmatpush1.bf16.msra.mxu0 %v989
        %1010 = vmatprep.subr.bf16.mxu0 %v992
        %1011 = vmatpush1.bf16.msra.mxu0 %v991
        %1012 = vmatprep.subr.bf16.mxu0 %v994
        %1013 = vmatpush1.bf16.msra.mxu0 %v993
        %1014 = vmatprep.subr.bf16.mxu0 %v996
        %1015 = vmatpush1.bf16.msra.mxu0 %v995
        %1016 = vmatprep.subr.bf16.mxu0 0
        %1017 = vmatpush1.bf16.msra.mxu0 0
        %1018 = vmatprep.subr.bf16.mxu0 0
        %1019 = vmatpush1.bf16.msra.mxu0 0
        %1020 = vmatprep.subr.bf16.mxu0 0
        %1021 = vmatpush1.bf16.msra.mxu0 0
        %1022 = vmatprep.subr.bf16.mxu0 0
        %1023 = vmatpush1.bf16.msra.mxu0 0
        %1024 = vmatprep.subr.bf16.mxu0 0
        %1025 = vmatpush1.bf16.msra.mxu0 0
        %1026 = vmatprep.subr.bf16.mxu0 0
        %1027 = vmatpush1.bf16.msra.mxu0 0
        %1028 = vmatprep.subr.bf16.mxu0 0
        %1029 = vmatpush1.bf16.msra.mxu0 0
        %1030 = vmatprep.subr.bf16.mxu0 0
        %1031 = vmatpush1.bf16.msra.mxu0 0
        %1032 = vmatprep.subr.bf16.mxu0 0
        %1033 = vmatpush1.bf16.msra.mxu0 0
        %1034 = vmatprep.subr.bf16.mxu0 0
        %1035 = vmatpush1.bf16.msra.mxu0 0
        %1036 = vmatprep.subr.bf16.mxu0 0
        %1037 = vmatpush1.bf16.msra.mxu0 0
        %1038 = vmatprep.subr.bf16.mxu0 0
        %1039 = vmatpush1.bf16.msra.mxu0 0
        %1040 = vmatprep.mubr.bf16.mxu0 0
        %1041 = vmatmul.mubr.bf16.gmra.mrb[0].mxu0 %v510
        %v1042 = vpop.f32.mrb[0].mxu0
        %v1043 = vadd.f32 %v1001, %v1042
        %v1044 = vpop.f32.mrb[0].mxu0
        %v1045 = vadd.f32 %v1005, %v1044
        %v1046 = vpop.f32.mrb[0].mxu0
        %v1047 = vadd.f32 %v1001, %v1046
        %v1048 = vpop.f32.mrb[0].mxu0
        %v1049 = vadd.f32 %v1005, %v1048
        %1050 = vmatprep.mubr.bf16.mxu0 0
        %1051 = vmatmul.mubr.bf16.gmra.mrb[0].mxu0 %v513
        %v1052 = vpop.f32.mrb[0].mxu0
        %v1053 = vadd.f32 %v1001, %v1052
        %v1054 = vpop.f32.mrb[0].mxu0
        %v1055 = vadd.f32 %v1005, %v1054
        %v1056 = vpop.f32.mrb[0].mxu0
        %v1057 = vadd.f32 %v1001, %v1056
        %v1058 = vpop.f32.mrb[0].mxu0
        %v1059 = vadd.f32 %v1005, %v1058
        %1060 = vmatprep.mubr.bf16.mxu0 0
        %1061 = vmatmul.mubr.bf16.gmra.mrb[0].mxu0 %v516
        %v1062 = vpop.f32.mrb[0].mxu0
        %v1063 = vadd.f32 %v1001, %v1062
        %v1064 = vpop.f32.mrb[0].mxu0
        %v1065 = vadd.f32 %v1005, %v1064
        %v1066 = vpop.f32.mrb[0].mxu0
        %v1067 = vadd.f32 %v1001, %v1066
        %v1068 = vpop.f32.mrb[0].mxu0
        %v1069 = vadd.f32 %v1005, %v1068
        %1070 = vmatprep.mubr.bf16.mxu0 0
        %1071 = vmatmul.mubr.bf16.gmra.mrb[0].mxu0 %v519
        %v1072 = vpop.f32.mrb[0].mxu0
        %v1073 = vadd.f32 %v1001, %v1072
        %v1074 = vpop.f32.mrb[0].mxu0
        %v1075 = vadd.f32 %v1005, %v1074
        %v1076 = vpop.f32.mrb[0].mxu0
        %v1077 = vadd.f32 %v1001, %v1076
        %v1078 = vpop.f32.mrb[0].mxu0
        %v1079 = vadd.f32 %v1005, %v1078
        %1080 = vdwg.mxu0
        %v1081 = vmax.f32 %v1043, 0.0
        %v1082 = vmax.f32 %v1045, 0.0
        %v1083 = vmax.f32 %v1047, 0.0
        %v1084 = vmax.f32 %v1049, 0.0
        %v1085 = vmax.f32 %v1053, 0.0
        %v1086 = vmax.f32 %v1055, 0.0
        %v1087 = vmax.f32 %v1057, 0.0
        %v1088 = vmax.f32 %v1059, 0.0
        %v1089 = vmax.f32 %v1063, 0.0
        %v1090 = vmax.f32 %v1065, 0.0
        %v1091 = vmax.f32 %v1067, 0.0
        %v1092 = vmax.f32 %v1069, 0.0
        %v1093 = vmax.f32 %v1073, 0.0
        %v1094 = vmax.f32 %v1075, 0.0
        %v1095 = vmax.f32 %v1077, 0.0
        %v1096 = vmax.f32 %v1079, 0.0
        %v1097 = vpack.c.bf16 %v1083, %v1081
        %v1098 = vpack.c.bf16 %v1087, %v1085
        %v1099 = vpack.c.bf16 %v1091, %v1089
        %v1100 = vpack.c.bf16 %v1095, %v1093
        %v1101 = vld [vmem:[%s5] sm:$0xf]
        %v1102 = vld [vmem:[%s5 + $0x4] sm:$0xf]
        %v1103 = vld [vmem:[%s5 + $0x8] sm:$0xf]
        %v1104 = vld [vmem:[%s5 + $0xc] sm:$0xf]
        %v1105 = vld [vmem:[%s5 + $0x10] sm:$0xf]
        %v1106 = vld [vmem:[%s5 + $0x14] sm:$0xf]
        %v1107 = vld [vmem:[%s5 + $0x18] sm:$0xf]
        %v1108 = vld [vmem:[%s5 + $0x1c] sm:$0xf]
        %v1109 = vld [vmem:[%s5 + $0x20] sm:$0xf]
        %v1110 = vld [vmem:[%s5 + $0x24] sm:$0xf]
        %v1111 = vld [vmem:[%s5 + $0x28] sm:$0xf]
        %v1112 = vld [vmem:[%s5 + $0x2c] sm:$0xf]
        %v1113 = vld [vmem:[%s5 + $0x30] sm:$0xf]
        %v1114 = vld [vmem:[%s5 + $0x34] sm:$0xf]
        %v1115 = vld [vmem:[%s5 + $0x38] sm:$0xf]
        %v1116 = vld [vmem:[%s5 + $0x3c] sm:$0xf]
        %v1133 = vunpack.c.l.b16 %v1101
        %v1134 = vunpack.c.l.b16 %v1102
        %v1135 = vunpack.c.l.b16 %v1103
        %v1136 = vunpack.c.l.b16 %v1104
        %v1137 = vunpack.c.l.b16 %v1105
        %v1138 = vunpack.c.l.b16 %v1106
        %v1139 = vunpack.c.l.b16 %v1107
        %v1140 = vunpack.c.l.b16 %v1108
        %v1141 = vunpack.c.l.b16 %v1109
        %v1142 = vunpack.c.l.b16 %v1110
        %v1143 = vunpack.c.l.b16 %v1111
        %v1144 = vunpack.c.l.b16 %v1112
        %v1145 = vunpack.c.l.b16 %v1113
        %v1146 = vunpack.c.l.b16 %v1114
        %v1147 = vunpack.c.l.b16 %v1115
        %v1148 = vunpack.c.l.b16 %v1116
        %v1149 = vpack.c.b16 %v1134, %v1133
        %v1150 = vpack.c.b16 %v1136, %v1135
        %v1151 = vpack.c.b16 %v1138, %v1137
        %v1152 = vpack.c.b16 %v1140, %v1139
        %v1153 = vpack.c.b16 %v1142, %v1141
        %v1154 = vpack.c.b16 %v1144, %v1143
        %v1155 = vpack.c.b16 %v1146, %v1145
        %v1156 = vpack.c.b16 %v1148, %v1147
        %1165 = vmatprep.subr.bf16.mxu0 0
        %1166 = vmatpush1.bf16.msra.mxu0 %v1149
        %1167 = vmatprep.subr.bf16.mxu0 0
        %1168 = vmatpush1.bf16.msra.mxu0 %v1150
        %1169 = vmatprep.subr.bf16.mxu0 0
        %1170 = vmatpush1.bf16.msra.mxu0 %v1151
        %1171 = vmatprep.subr.bf16.mxu0 0
        %1172 = vmatpush1.bf16.msra.mxu0 %v1152
        %1173 = vmatprep.subr.bf16.mxu0 0
        %1174 = vmatpush1.bf16.msra.mxu0 %v1153
        %1175 = vmatprep.subr.bf16.mxu0 0
        %1176 = vmatpush1.bf16.msra.mxu0 %v1154
        %1177 = vmatprep.subr.bf16.mxu0 0
        %1178 = vmatpush1.bf16.msra.mxu0 %v1155
        %1179 = vmatprep.subr.bf16.mxu0 0
        %1180 = vmatpush1.bf16.msra.mxu0 %v1156
        %1181 = vmatprep.subr.bf16.mxu0 0
        %1182 = vmatpush1.bf16.msra.mxu0 0
        %1183 = vmatprep.subr.bf16.mxu0 0
        %1184 = vmatpush1.bf16.msra.mxu0 0
        %1185 = vmatprep.subr.bf16.mxu0 0
        %1186 = vmatpush1.bf16.msra.mxu0 0
        %1187 = vmatprep.subr.bf16.mxu0 0
        %1188 = vmatpush1.bf16.msra.mxu0 0
        %1189 = vmatprep.subr.bf16.mxu0 0
        %1190 = vmatpush1.bf16.msra.mxu0 0
        %1191 = vmatprep.subr.bf16.mxu0 0
        %1192 = vmatpush1.bf16.msra.mxu0 0
        %1193 = vmatprep.subr.bf16.mxu0 0
        %1194 = vmatpush1.bf16.msra.mxu0 0
        %1195 = vmatprep.subr.bf16.mxu0 0
        %1196 = vmatpush1.bf16.msra.mxu0 0
        %1197 = vmatprep.mubr.bf16.mxu0 0
        %1198 = vmatmul.mubr.bf16.gmra.mrb[0].mxu0 %v1097
        %v1199 = vpop.f32.mrb[0].mxu0
        %v1200 = vadd.f32 %v453, %v1199
        %v1201 = vpop.f32.mrb[0].mxu0
        %v1202 = vpop.f32.mrb[0].mxu0
        %v1203 = vadd.f32 %v453, %v1202
        %v1204 = vpop.f32.mrb[0].mxu0
        %1205 = vmatprep.mubr.bf16.mxu0 0
        %1206 = vmatmul.mubr.bf16.gmra.mrb[0].mxu0 %v1098
        %v1207 = vpop.f32.mrb[0].mxu0
        %v1208 = vadd.f32 %v453, %v1207
        %v1209 = vpop.f32.mrb[0].mxu0
        %v1210 = vpop.f32.mrb[0].mxu0
        %v1211 = vadd.f32 %v453, %v1210
        %v1212 = vpop.f32.mrb[0].mxu0
        %1213 = vmatprep.mubr.bf16.mxu0 0
        %1214 = vmatmul.mubr.bf16.gmra.mrb[0].mxu0 %v1099
        %v1215 = vpop.f32.mrb[0].mxu0
        %v1216 = vadd.f32 %v453, %v1215
        %v1217 = vpop.f32.mrb[0].mxu0
        %v1218 = vpop.f32.mrb[0].mxu0
        %v1219 = vadd.f32 %v453, %v1218
        %v1220 = vpop.f32.mrb[0].mxu0
        %1221 = vmatprep.mubr.bf16.mxu0 0
        %1222 = vmatmul.mubr.bf16.gmra.mrb[0].mxu0 %v1100
        %v1223 = vpop.f32.mrb[0].mxu0
        %v1224 = vadd.f32 %v453, %v1223
        %v1225 = vpop.f32.mrb[0].mxu0
        %v1226 = vpop.f32.mrb[0].mxu0
        %v1227 = vadd.f32 %v453, %v1226
        %v1228 = vpop.f32.mrb[0].mxu0
        %1229 = vdwg.mxu0
        %v1230 = vtanh.pop %v1200
        %v1231 = vtanh.pop %v1203
        %v1232 = vtanh.pop %v1208
        %v1233 = vtanh.pop %v1211
        %v1234 = vtanh.pop %v1216
        %v1235 = vtanh.pop %v1219
        %v1236 = vtanh.pop %v1224
        %v1237 = vtanh.pop %v1227
        %v1238 = vpack.c.bf16 %v1231, %v1230
        %v1239 = vpack.c.bf16 %v1233, %v1232
        %v1240 = vpack.c.bf16 %v1235, %v1234
        %v1241 = vpack.c.bf16 %v1237, %v1236
        %v1246 = vunpack.c.l.b16 %v1238
        %v1247 = vunpack.c.h.b16 %v1238
        %v1248 = vunpack.c.l.b16 %v1239
        %v1249 = vunpack.c.h.b16 %v1239
        %v1250 = vunpack.c.l.b16 %v1240
        %v1251 = vunpack.c.h.b16 %v1240
        %v1252 = vunpack.c.l.b16 %v1241
        %v1253 = vunpack.c.h.b16 %v1241
        %v1254 = vpack.c.b16 %v1246, %v1246
        %v1255 = vpack.c.b16 %v1247, %v1247
        %v1256 = vpack.c.b16 %v1248, %v1248
        %v1257 = vpack.c.b16 %v1249, %v1249
        %v1258 = vpack.c.b16 %v1250, %v1250
        %v1259 = vpack.c.b16 %v1251, %v1251
        %v1260 = vpack.c.b16 %v1252, %v1252
        %v1261 = vpack.c.b16 %v1253, %v1253
        %1270 = vst [vmem:[%s426] sm:$0xf] %v1254
        %1271 = vst [vmem:[%s426 + $0x4] sm:$0xf] %v1255
        %1272 = vst [vmem:[%s426 + $0x8] sm:$0xf] %v1256
        %1273 = vst [vmem:[%s426 + $0xc] sm:$0xf] %v1257
        %1274 = vst [vmem:[%s426 + $0x10] sm:$0xf] %v1258
        %1275 = vst [vmem:[%s426 + $0x14] sm:$0xf] %v1259
        %1276 = vst [vmem:[%s426 + $0x18] sm:$0xf] %v1260
        %1277 = vst [vmem:[%s426 + $0x1c] sm:$0xf] %v1261
        %v1278 = vld [vmem:[#allocation5] sm:$0xf]
        %v1279 = vpack.c.bf16 %v1084, %v1082
        %v1280 = vpack.c.bf16 %v1088, %v1086
        %v1281 = vpack.c.bf16 %v1092, %v1090
        %v1282 = vpack.c.bf16 %v1096, %v1094
        %v1284 = vsel %vm508, %v1278, 0
        %1286 = vmatprep.subr.bf16.mxu0 0
        %1287 = vmatpush1.bf16.msra.mxu0 %v1279
        %1288 = vmatprep.subr.bf16.mxu0 0
        %1289 = vmatpush1.bf16.msra.mxu0 %v1280
        %1290 = vmatprep.subr.bf16.mxu0 0
        %1291 = vmatpush1.bf16.msra.mxu0 %v1281
        %1292 = vmatprep.subr.bf16.mxu0 0
        %1293 = vmatpush1.bf16.msra.mxu0 %v1282
        %1294 = vmatprep.subr.bf16.mxu0 0
        %1295 = vmatpush1.bf16.msra.mxu0 0
        %1296 = vmatprep.subr.bf16.mxu0 0
        %1297 = vmatpush1.bf16.msra.mxu0 0
        %1298 = vmatprep.subr.bf16.mxu0 0
        %1299 = vmatpush1.bf16.msra.mxu0 0
        %1300 = vmatprep.subr.bf16.mxu0 0
        %1301 = vmatpush1.bf16.msra.mxu0 0
        %1302 = vmatprep.subr.bf16.mxu0 0
        %1303 = vmatpush1.bf16.msra.mxu0 0
        %1304 = vmatprep.subr.bf16.mxu0 0
        %1305 = vmatpush1.bf16.msra.mxu0 0
        %1306 = vmatprep.subr.bf16.mxu0 0
        %1307 = vmatpush1.bf16.msra.mxu0 0
        %1308 = vmatprep.subr.bf16.mxu0 0
        %1309 = vmatpush1.bf16.msra.mxu0 0
        %1310 = vmatprep.subr.bf16.mxu0 0
        %1311 = vmatpush1.bf16.msra.mxu0 0
        %1312 = vmatprep.subr.bf16.mxu0 0
        %1313 = vmatpush1.bf16.msra.mxu0 0
        %1314 = vmatprep.subr.bf16.mxu0 0
        %1315 = vmatpush1.bf16.msra.mxu0 0
        %1316 = vmatprep.subr.bf16.mxu0 0
        %1317 = vmatpush1.bf16.msra.mxu0 0
        %1318 = vmatprep.mubr.bf16.mxu0 0
        %1319 = vmatmul.mubr.bf16.gmra.mrb[0].mxu0 %v1284
        %v1320 = vpop.f32.mrb[0].mxu0
        %v1321 = vadd.f32 0.0, %v1320
        %v1322 = vpop.f32.mrb[0].mxu0
        %v1323 = vpop.f32.mrb[0].mxu0
        %v1324 = vpop.f32.mrb[0].mxu0
        %1325 = vdwg.mxu0
        %v1326 = vpack.c.bf16 %v1321, %v1321
        %v1327 = vld [vmem:[%s6] sm:$0xf]
        %v1328 = vld [vmem:[%s6 + $0x4] sm:$0xf]
        %v1329 = vld [vmem:[%s6 + $0x8] sm:$0xf]
        %v1330 = vld [vmem:[%s6 + $0xc] sm:$0xf]
        %v1331 = vld [vmem:[%s6 + $0x10] sm:$0xf]
        %v1332 = vld [vmem:[%s6 + $0x14] sm:$0xf]
        %v1333 = vld [vmem:[%s6 + $0x18] sm:$0xf]
        %v1334 = vld [vmem:[%s6 + $0x1c] sm:$0xf]
        %v1335 = vld [vmem:[%s6 + $0x20] sm:$0xf]
        %v1336 = vld [vmem:[%s6 + $0x24] sm:$0xf]
        %v1337 = vld [vmem:[%s6 + $0x28] sm:$0xf]
        %v1338 = vld [vmem:[%s6 + $0x2c] sm:$0xf]
        %v1339 = vld [vmem:[%s6 + $0x30] sm:$0xf]
        %v1340 = vld [vmem:[%s6 + $0x34] sm:$0xf]
        %v1341 = vld [vmem:[%s6 + $0x38] sm:$0xf]
        %v1342 = vld [vmem:[%s6 + $0x3c] sm:$0xf]
        %v1359 = vunpack.c.l.b16 %v1327
        %v1360 = vunpack.c.l.b16 %v1328
        %v1361 = vunpack.c.l.b16 %v1329
        %v1362 = vunpack.c.l.b16 %v1330
        %v1363 = vunpack.c.l.b16 %v1331
        %v1364 = vunpack.c.l.b16 %v1332
        %v1365 = vunpack.c.l.b16 %v1333
        %v1366 = vunpack.c.l.b16 %v1334
        %v1367 = vunpack.c.l.b16 %v1335
        %v1368 = vunpack.c.l.b16 %v1336
        %v1369 = vunpack.c.l.b16 %v1337
        %v1370 = vunpack.c.l.b16 %v1338
        %v1371 = vunpack.c.l.b16 %v1339
        %v1372 = vunpack.c.l.b16 %v1340
        %v1373 = vunpack.c.l.b16 %v1341
        %v1374 = vunpack.c.l.b16 %v1342
        %v1375 = vpack.c.b16 %v1360, %v1359
        %v1376 = vpack.c.b16 %v1362, %v1361
        %v1377 = vpack.c.b16 %v1364, %v1363
        %v1378 = vpack.c.b16 %v1366, %v1365
        %v1379 = vpack.c.b16 %v1368, %v1367
        %v1380 = vpack.c.b16 %v1370, %v1369
        %v1381 = vpack.c.b16 %v1372, %v1371
        %v1382 = vpack.c.b16 %v1374, %v1373
        %1391 = vmatprep.subr.bf16.mxu0 0
        %1392 = vmatpush1.bf16.msra.mxu0 %v1375
        %1393 = vmatprep.subr.bf16.mxu0 0
        %1394 = vmatpush1.bf16.msra.mxu0 %v1376
        %1395 = vmatprep.subr.bf16.mxu0 0
        %1396 = vmatpush1.bf16.msra.mxu0 %v1377
        %1397 = vmatprep.subr.bf16.mxu0 0
        %1398 = vmatpush1.bf16.msra.mxu0 %v1378
        %1399 = vmatprep.subr.bf16.mxu0 0
        %1400 = vmatpush1.bf16.msra.mxu0 %v1379
        %1401 = vmatprep.subr.bf16.mxu0 0
        %1402 = vmatpush1.bf16.msra.mxu0 %v1380
        %1403 = vmatprep.subr.bf16.mxu0 0
        %1404 = vmatpush1.bf16.msra.mxu0 %v1381
        %1405 = vmatprep.subr.bf16.mxu0 0
        %1406 = vmatpush1.bf16.msra.mxu0 %v1382
        %1407 = vmatprep.subr.bf16.mxu0 0
        %1408 = vmatpush1.bf16.msra.mxu0 0
        %1409 = vmatprep.subr.bf16.mxu0 0
        %1410 = vmatpush1.bf16.msra.mxu0 0
        %1411 = vmatprep.subr.bf16.mxu0 0
        %1412 = vmatpush1.bf16.msra.mxu0 0
        %1413 = vmatprep.subr.bf16.mxu0 0
        %1414 = vmatpush1.bf16.msra.mxu0 0
        %1415 = vmatprep.subr.bf16.mxu0 0
        %1416 = vmatpush1.bf16.msra.mxu0 0
        %1417 = vmatprep.subr.bf16.mxu0 0
        %1418 = vmatpush1.bf16.msra.mxu0 0
        %1419 = vmatprep.subr.bf16.mxu0 0
        %1420 = vmatpush1.bf16.msra.mxu0 0
        %1421 = vmatprep.subr.bf16.mxu0 0
        %1422 = vmatpush1.bf16.msra.mxu0 0
        %1423 = vmatprep.mubr.bf16.mxu0 0
        %1424 = vmatmul.mubr.bf16.gmra.mrb[0].mxu0 %v1326
        %v1425 = vpop.f32.mrb[0].mxu0
        %v1426 = vadd.f32 %v454, %v1425
        %v1427 = vpop.f32.mrb[0].mxu0
        %v1428 = vpop.f32.mrb[0].mxu0
        %v1429 = vpop.f32.mrb[0].mxu0
        %1430 = vdwg.mxu0
        %v1431 = vmax.f32 %v1426, 0.0
        %v1432 = vpack.c.bf16 %v1431, %v1431
        %v1433 = vld [vmem:[#allocation10] sm:$0xf]
        %v1434 = vld [vmem:[#allocation10 + $0x4] sm:$0xf]
        %v1435 = vld [vmem:[#allocation10 + $0x8] sm:$0xf]
        %v1436 = vld [vmem:[#allocation10 + $0xc] sm:$0xf]
        %v1437 = vld [vmem:[#allocation10 + $0x10] sm:$0xf]
        %v1438 = vld [vmem:[#allocation10 + $0x14] sm:$0xf]
        %v1439 = vld [vmem:[#allocation10 + $0x18] sm:$0xf]
        %v1440 = vld [vmem:[#allocation10 + $0x1c] sm:$0xf]
        %v1441 = vld [vmem:[#allocation10 + $0x20] sm:$0xf]
        %v1442 = vld [vmem:[#allocation10 + $0x24] sm:$0xf]
        %v1443 = vld [vmem:[#allocation10 + $0x28] sm:$0xf]
        %v1444 = vld [vmem:[#allocation10 + $0x2c] sm:$0xf]
        %v1445 = vld [vmem:[#allocation10 + $0x30] sm:$0xf]
        %v1446 = vld [vmem:[#allocation10 + $0x34] sm:$0xf]
        %v1447 = vld [vmem:[#allocation10 + $0x38] sm:$0xf]
        %v1448 = vld [vmem:[#allocation10 + $0x3c] sm:$0xf]
        %v1465 = vunpack.c.l.b16 %v1433
        %v1466 = vunpack.c.l.b16 %v1434
        %v1467 = vunpack.c.l.b16 %v1435
        %v1468 = vunpack.c.l.b16 %v1436
        %v1469 = vunpack.c.l.b16 %v1437
        %v1470 = vunpack.c.l.b16 %v1438
        %v1471 = vunpack.c.l.b16 %v1439
        %v1472 = vunpack.c.l.b16 %v1440
        %v1473 = vunpack.c.l.b16 %v1441
        %v1474 = vunpack.c.l.b16 %v1442
        %v1475 = vunpack.c.l.b16 %v1443
        %v1476 = vunpack.c.l.b16 %v1444
        %v1477 = vunpack.c.l.b16 %v1445
        %v1478 = vunpack.c.l.b16 %v1446
        %v1479 = vunpack.c.l.b16 %v1447
        %v1480 = vunpack.c.l.b16 %v1448
        %v1481 = vpack.c.b16 %v1466, %v1465
        %v1482 = vpack.c.b16 %v1468, %v1467
        %v1483 = vpack.c.b16 %v1470, %v1469
        %v1484 = vpack.c.b16 %v1472, %v1471
        %v1485 = vpack.c.b16 %v1474, %v1473
        %v1486 = vpack.c.b16 %v1476, %v1475
        %v1487 = vpack.c.b16 %v1478, %v1477
        %v1488 = vpack.c.b16 %v1480, %v1479
        %1497 = vmatprep.subr.bf16.mxu0 0
        %1498 = vmatpush1.bf16.msra.mxu0 %v1481
        %1499 = vmatprep.subr.bf16.mxu0 0
        %1500 = vmatpush1.bf16.msra.mxu0 %v1482
        %1501 = vmatprep.subr.bf16.mxu0 0
        %1502 = vmatpush1.bf16.msra.mxu0 %v1483
        %1503 = vmatprep.subr.bf16.mxu0 0
        %1504 = vmatpush1.bf16.msra.mxu0 %v1484
        %1505 = vmatprep.subr.bf16.mxu0 0
        %1506 = vmatpush1.bf16.msra.mxu0 %v1485
        %1507 = vmatprep.subr.bf16.mxu0 0
        %1508 = vmatpush1.bf16.msra.mxu0 %v1486
        %1509 = vmatprep.subr.bf16.mxu0 0
        %1510 = vmatpush1.bf16.msra.mxu0 %v1487
        %1511 = vmatprep.subr.bf16.mxu0 0
        %1512 = vmatpush1.bf16.msra.mxu0 %v1488
        %1513 = vmatprep.subr.bf16.mxu0 0
        %1514 = vmatpush1.bf16.msra.mxu0 0
        %1515 = vmatprep.subr.bf16.mxu0 0
        %1516 = vmatpush1.bf16.msra.mxu0 0
        %1517 = vmatprep.subr.bf16.mxu0 0
        %1518 = vmatpush1.bf16.msra.mxu0 0
        %1519 = vmatprep.subr.bf16.mxu0 0
        %1520 = vmatpush1.bf16.msra.mxu0 0
        %1521 = vmatprep.subr.bf16.mxu0 0
        %1522 = vmatpush1.bf16.msra.mxu0 0
        %1523 = vmatprep.subr.bf16.mxu0 0
        %1524 = vmatpush1.bf16.msra.mxu0 0
        %1525 = vmatprep.subr.bf16.mxu0 0
        %1526 = vmatpush1.bf16.msra.mxu0 0
        %1527 = vmatprep.subr.bf16.mxu0 0
        %1528 = vmatpush1.bf16.msra.mxu0 0
        %1529 = vmatprep.mubr.bf16.mxu0 0
        %1530 = vmatmul.mubr.bf16.gmra.mrb[0].mxu0 %v1432
        %v1531 = vpop.f32.mrb[0].mxu0
        %v1532 = vadd.f32 %v455, %v1531
        %v1533 = vpop.f32.mrb[0].mxu0
        %v1534 = vpop.f32.mrb[0].mxu0
        %v1535 = vpop.f32.mrb[0].mxu0
        %1536 = vdwg.mxu0
        %1537 = vst [vmem:[%s433] sm:$0xff] %v1532
        %s1538 = sand.u32 %s233, 1
        %s1539 = scalar_lea.sflag [#allocation4], %s1538
        %s1540 = sand.u32 %s233, 1
        %s1541 = smul.addr %s1540, 32
        %s1542 = scalar_lea.vmem [#allocation11], %s1541
        %s1543 = sand.u32 %s259, 1
        %s1544 = scalar_lea.sflag [#allocation13], %s1543
        %s1545 = sand.u32 %s259, 1
        %s1546 = smul.addr %s1545, 8
        %s1547 = scalar_lea.vmem [#allocation12], %s1546
        // Predicated region
        $region77: #{tpu_custom_call.1} parent=55 // pred_check
          %p1548 = pneg %p243
        $region78: #{tpu_custom_call.1} parent=55 // pred_check_branch
          %1550 = sbr.rel (%p1548) target = $region80
        $region79: #{tpu_custom_call.1} parent=55 // pred_region
          %s1551 = smul.u32 8, %s31
          %s1553 = ssub.s32 512, 512
          %1554 = vsyncadd %s1539, %s1553
          %s1555 = smul.addr %s1551, 64
          %s1556 = scalar_lea.hbm %s9, %s1555
          %s1557 = sshll.u32 %s1542, 4
          %s1558 = int_to_ptr.vmem [resolvable:$true] %s1557
          %1563 = dma.vmem_to_hbm [thread:$0]  %s1558, 512, %s1556, %s1539, 64, 64, 4
        $region80: #{tpu_custom_call.1} parent=55 // pred_fallthru
          _
        // Predicated region
        $region81: #{tpu_custom_call.1} parent=55 // pred_check
          %p1564 = pneg %p269
        $region82: #{tpu_custom_call.1} parent=55 // pred_check_branch
          %1566 = sbr.rel (%p1564) target = $region84
        $region83: #{tpu_custom_call.1} parent=55 // pred_region
          %s1568 = ssub.s32 128, 128
          %1569 = vsyncadd %s1544, %s1568
          %s1570 = smul.addr %s31, 128
          %s1571 = scalar_lea.hbm %s10, %s1570
          %s1573 = sshll.u32 %s1547, 4
          %s1574 = int_to_ptr.vmem [resolvable:$true] %s1573
          %1576 = dma.vmem_to_hbm [thread:$0]  %s1574, 128, %s1571, %s1544
        $region84: #{tpu_custom_call.1} parent=55 // pred_fallthru
          _
      $region56: #{tpu_custom_call.1} parent=5 // pred_fallthru
        _
      %p1577 = scmp.le.s32.totalorder 2, %s26
      // Predicated region
      $region85: #{tpu_custom_call.1} parent=5 // pred_check
        %p1578 = pneg %p1577
      $region86: #{tpu_custom_call.1} parent=5 // pred_check_branch
        %1580 = sbr.rel (%p1578) target = $region88
      $region87: #{tpu_custom_call.1} parent=5 // pred_region
        %s1581 = ssub.s32 %s26, 2
        // Predicated region
        $region89: #{tpu_custom_call.1} parent=87 // pred_check
          %p1582 = pneg %p249
        $region90: #{tpu_custom_call.1} parent=87 // pred_check_branch
          %1584 = sbr.rel (%p1582) target = $region92
        $region91: #{tpu_custom_call.1} parent=87 // pred_region
          %s1585 = sand.u32 %s234, 1
          %s1586 = scalar_lea.sflag [#allocation4], %s1585
          %s1587 = sand.u32 %s234, 1
          %s1588 = smul.addr %s1587, 32
          %s1589 = scalar_lea.vmem [#allocation11], %s1588
          %1590 = dma.done %s1586, 512
        $region92: #{tpu_custom_call.1} parent=87 // pred_fallthru
          _
        // Predicated region
        $region93: #{tpu_custom_call.1} parent=87 // pred_check
          %p1591 = pneg %p275
        $region94: #{tpu_custom_call.1} parent=87 // pred_check_branch
          %1593 = sbr.rel (%p1591) target = $region96
        $region95: #{tpu_custom_call.1} parent=87 // pred_region
          %s1594 = sand.u32 %s260, 1
          %s1595 = scalar_lea.sflag [#allocation13], %s1594
          %s1596 = sand.u32 %s260, 1
          %s1597 = smul.addr %s1596, 8
          %s1598 = scalar_lea.vmem [#allocation12], %s1597
          %1599 = dma.done %s1595, 128
        $region96: #{tpu_custom_call.1} parent=87 // pred_fallthru
          _
      $region88: #{tpu_custom_call.1} parent=5 // pred_fallthru
        _
    $region6: #{tpu_custom_call.1} parent=1 // loop_footer
      %s30 = sadd.s32 1, %s26
    $region7: #{tpu_custom_call.1} parent=1 // loop_footer_branch
      %25 = sbr.rel target = $region3
    $region8: #{tpu_custom_call.1} parent=1 // loop_exit
      _
    %1600 = vsyncpa [#allocation3], 1
    %s1601 = scalar_lea.sflag [#allocation3], 1
    %1602 = vsyncpa %s1601, 1
    %1603 = vsyncpa [#allocation6], 1
    %1604 = vsyncpa [#allocation9], 1
    %1605 = vsyncpa [#allocation4], 1
    %s1606 = scalar_lea.sflag [#allocation4], 1
    %1607 = vsyncpa %s1606, 1
    %1608 = vsyncpa [#allocation13], 1
    %s1609 = scalar_lea.sflag [#allocation13], 1
    %1610 = vsyncpa %s1609, 1

</llo_original>
